<compile_context>
chip_gen: v6e
topology: v6e:2x2x1
jax: 0.10.0
libtpu: 0.0.40
codegen_flags: <defaults>
</compile_context>

<pallas_src>
import functools

import numpy as np
import jax
import jax.numpy as jnp
from jax import lax
from jax.experimental import pallas as pl
from jax.experimental.pallas import tpu as pltpu


def _conv_stack_kernel(x_ref, w_ref, b_ref, m_ref, o_ref, buf_ref, col_ref, *,
                       n_layers, height, width, crop, guard):
    """Fused CONV_stack_3D_to_2D forward for one batch element.

    x_ref  : (1, C, P)        compute-dtype zero-padded input plane, P = (H+2)*(W+2)
    w_ref  : (L, C, 9*C)      compute-dtype center-z weights, inner order (kh, kw, cin)
    b_ref  : (L, C, 1)        f32 biases
    m_ref  : (1, P)           f32 interior mask (1 inside the plane, 0 on the pad border)
    o_ref  : (1, C, H*Wout)   f32 cropped interior output with the residual column added
    buf_ref: (C, P + 2*G)     compute-dtype guard-extended activation plane, G = guard
    col_ref: (9*C, P)         compute-dtype im2col staging buffer (matmul RHS)
    """
    _, C, P = x_ref.shape
    H, W = height, width
    Wout = W - 2 * crop
    G = guard
    cdtype = buf_ref.dtype

    # Only the guard strips need clearing every grid step (never gate this on program_id==0:
    # under 'parallel' megacore sharding core 1 never runs step 0).  The plane border itself
    # arrives zero from the wrapper pad and is re-zeroed between layers via the fused mask.
    buf_ref[:, :G] = jnp.zeros((C, G), cdtype)
    buf_ref[:, G + P:] = jnp.zeros((C, G), cdtype)
    buf_ref[:, G:G + P] = x_ref[0]

    act = None
    for l in range(n_layers):
        # im2col: stage the 9 shifted tap views of the padded plane as one (9*C, P) RHS ...
        for kh in range(3):
            for kw in range(3):
                s = (kh - 1) * (W + 2) + (kw - 1)
                kk = kh * 3 + kw
                col_ref[kk * C:(kk + 1) * C, :] = buf_ref[:, G + s:G + s + P]
        # ... and reduce channels x taps in ONE MXU matmul (K = 9*C), accumulating in f32.
        acc = jnp.dot(w_ref[l], col_ref[...], preferred_element_type=jnp.float32)
        act = jnp.maximum(acc + b_ref[l], 0.0)                      # bias added once, post-matmul
        if l + 1 < n_layers:
            # Writeback for the next layer.  Border lanes were computed from guard/garbage and
            # must read back as zero 'same' padding; the mask multiply is fused into the
            # ReLU -> cast chain (one VALU op on data already in registers).
            buf_ref[:, G:G + P] = (act * m_ref[...]).astype(cdtype)

    # Epilogue inside the kernel: slice the cropped interior out of the flat padded plane and
    # add the residual (center W column of the ORIGINAL input, broadcast over Wout), row by
    # row, so only H*Wout lanes per channel ever reach HBM.
    for r in range(H):
        row0 = (r + 1) * (W + 2)
        seg = act[:, row0 + 1 + crop: row0 + 1 + crop + Wout]             # (C, Wout) f32
        res = x_ref[0, :, row0 + 1 + W // 2: row0 + 2 + W // 2]           # (C, 1)
        o_ref[0, :, r * Wout:(r + 1) * Wout] = seg + res.astype(jnp.float32)


def conv_stack_3d_to_2d(x, params, compute_dtype=jnp.bfloat16):
    """Forward pass of CONV_stack_3D_to_2D (batch_norm=False, kernel=3, z_kernel=3, ReLU).

    x      : (N, C, H, W) float32, NCHW
    params : list of (conv3d_weight (C, C, 3, 3, 3), bias (C,)) per stacked layer
    returns: (N, C, H, W - 2*stack_num) float32
    """
    # TODO(synk): the PyTorch residual line `tmp[:, :, :, depth//2:depth//2+1, :]` indexes a
    # 4-D tensor with 5 indices (invalid as written); we implement the evident intent: add the
    # central W column of the input.  The zero channel-padding of `tmp` is a no-op for the C
    # channels actually used.
    N, C, H, W = x.shape
    L = len(params)
    assert L >= 1
    for w3d, _ in params:
        assert w3d.shape == (C, C, 3, 3, 3), "only kernel_size=3 / z_kernel_size=3 supported"

    crop = L                               # z_kernel_size//2 == 1 column per side, per layer
    Wout = W - 2 * crop
    P = (H + 2) * (W + 2)
    guard = ((W + 3 + 127) // 128) * 128   # >= max tap offset; 128-aligned plane start in buf

    # Center-z 2-D weights, reordered (Cout, kh, kw, Cin) -> (Cout, 9*Cin) to match the im2col
    # row order (tap-major, cin-minor) used in the kernel; fed to the MXU in compute_dtype.
    w_stack = jnp.stack(
        [jnp.transpose(w3d[:, :, :, :, w3d.shape[-1] // 2], (0, 2, 3, 1)).reshape(C, 9 * C)
         for w3d, _ in params]).astype(compute_dtype)                          # (L, C, 9C)
    b_stack = jnp.stack([b for _, b in params]).astype(jnp.float32)[:, :, None]  # (L, C, 1)

    xp = jnp.pad(x.astype(compute_dtype), ((0, 0), (0, 0), (1, 1), (1, 1)))
    x_flat = xp.reshape(N, C, P)
    interior = jnp.pad(jnp.ones((H, W), jnp.float32), ((1, 1), (1, 1))).reshape(1, P)

    kernel = functools.partial(_conv_stack_kernel, n_layers=L, height=H, width=W,
                               crop=crop, guard=guard)
    out_flat = pl.pallas_call(
        kernel,
        out_shape=jax.ShapeDtypeStruct((N, C, H * Wout), jnp.float32),
        grid=(N,),
        in_specs=[
            pl.BlockSpec((1, C, P), lambda n: (n, 0, 0)),
            pl.BlockSpec((L, C, 9 * C), lambda n: (0, 0, 0)),
            pl.BlockSpec((L, C, 1), lambda n: (0, 0, 0)),
            pl.BlockSpec((1, P), lambda n: (0, 0)),
        ],
        out_specs=pl.BlockSpec((1, C, H * Wout), lambda n: (n, 0, 0)),
        scratch_shapes=[
            pltpu.VMEM((C, P + 2 * guard), compute_dtype),   # guard-extended activation plane
            pltpu.VMEM((9 * C, P), compute_dtype),           # im2col matmul RHS
        ],
        compiler_params=pltpu.CompilerParams(
            dimension_semantics=("parallel",),
            # Explicit (v5e default scoped limit is only 16 MiB); demo working set is << this.
            vmem_limit_bytes=32 * 1024 * 1024,
        ),
    )(x_flat, w_stack, b_stack, interior)

    # Splitting the contiguous trailing dim is a free metadata reshape.
    return out_flat.reshape(N, C, H, Wout)


# --------------------------------------------------------------------------------------------
# Pure-JAX reference mirroring the (repaired) PyTorch forward
# --------------------------------------------------------------------------------------------
def reference_forward(x, params, z_kernel_size=3):
    X_input = x
    z_pad = z_kernel_size // 2
    h = x[..., None].astype(jnp.float32)                   # (N, C, H, W, 1)  NCDHW
    for w3d, b in params:
        h = lax.conv_general_dilated(
            h, w3d.astype(jnp.float32),
            window_strides=(1, 1, 1),
            padding=((1, 1), (1, 1), (z_pad, z_pad)),       # 'same'
            dimension_numbers=("NCDHW", "OIDHW", "NCDHW"),
            precision=jax.lax.Precision.HIGHEST)
        h = h + b[None, :, None, None, None]
        h = h[:, :, :, z_pad:-z_pad, :]                     # valid-z crop of the original W axis
        h = jnp.maximum(h, 0.0)
    depth = X_input.shape[-1]
    resid = X_input[:, :, :, depth // 2:depth // 2 + 1][..., None]
    h = h + resid
    return jnp.squeeze(h, axis=-1)


if __name__ == "__main__":
    key = jax.random.PRNGKey(0)

    def make_params(key, C, L, scale_w=0.1, scale_b=0.05):
        params = []
        for _ in range(L):
            key, kw_, kb_ = jax.random.split(key, 3)
            w3d = scale_w * jax.random.normal(kw_, (C, C, 3, 3, 3), jnp.float32)
            b = scale_b * jax.random.normal(kb_, (C,), jnp.float32)
            params.append((w3d, b))
        return key, params

    # --- small-channel config (C=4): fused im2col matmul with K = 9*4 = 36 ------------------
    N, C, H, W, L = 2, 4, 16, 16, 2
    key, kx = jax.random.split(key)
    x = jax.random.normal(kx, (N, C, H, W), jnp.float32)
    key, params = make_params(key, C, L)
    ref = jax.block_until_ready(reference_forward(x, params))

    out_f32 = jax.block_until_ready(conv_stack_3d_to_2d(x, params, compute_dtype=jnp.float32))
    assert out_f32.shape == (N, C, H, W - 2 * L), out_f32.shape
    # f32 feed: the in-kernel f32 matmul may still run as multi-pass bf16 on the MXU.
    np.testing.assert_allclose(np.asarray(out_f32), np.asarray(ref), atol=1e-2, rtol=1e-2)

    out_bf16 = jax.block_until_ready(conv_stack_3d_to_2d(x, params))   # default bf16 MXU feed
    assert out_bf16.shape == (N, C, H, W - 2 * L), out_bf16.shape
    # bf16 activations/weights with f32 accumulation vs. a HIGHEST-precision f32 reference.
    np.testing.assert_allclose(np.asarray(out_bf16), np.asarray(ref), atol=6e-2, rtol=6e-2)

    # --- wider-channel config (C=16): fused contraction K = 9*16 = 144 ----------------------
    N2, C2, H2, W2, L2 = 2, 16, 16, 16, 2
    key, kx2 = jax.random.split(key)
    x2 = jax.random.normal(kx2, (N2, C2, H2, W2), jnp.float32)
    key, params2 = make_params(key, C2, L2, scale_w=0.05)
    ref2 = jax.block_until_ready(reference_forward(x2, params2))

    out2_f32 = jax.block_until_ready(conv_stack_3d_to_2d(x2, params2, compute_dtype=jnp.float32))
    assert out2_f32.shape == (N2, C2, H2, W2 - 2 * L2), out2_f32.shape
    np.testing.assert_allclose(np.asarray(out2_f32), np.asarray(ref2), atol=1e-2, rtol=1e-2)

    out2_bf16 = jax.block_until_ready(conv_stack_3d_to_2d(x2, params2))
    assert out2_bf16.shape == (N2, C2, H2, W2 - 2 * L2), out2_bf16.shape
    np.testing.assert_allclose(np.asarray(out2_bf16), np.asarray(ref2), atol=6e-2, rtol=6e-2)

    print("KERNEL_OK")
</pallas_src>

<mosaic_0001>
module attributes {stable_mosaic.version = 11 : i64} {
  func.func @_conv_stack_kernel(%arg0: i32, %arg1: memref<1x4x324xf32, #tpu.memory_space<vmem>>, %arg2: memref<2x4x36xf32, #tpu.memory_space<vmem>>, %arg3: memref<2x4x1xf32, #tpu.memory_space<vmem>>, %arg4: memref<1x324xf32, #tpu.memory_space<vmem>>, %arg5: memref<1x4x192xf32, #tpu.memory_space<vmem>>, %arg6: memref<4x580xf32, #tpu.memory_space<vmem>>, %arg7: memref<36x324xf32, #tpu.memory_space<vmem>>) attributes {dimension_semantics = [#tpu.dimension_semantics<parallel>], iteration_bounds = array<i64: 2>, scalar_prefetch = 0 : i64, scratch_operands = 2 : i64, tpu.core_type = #tpu.core_type<tc>, window_params = [{transform_indices = @transform_0, window_bounds = array<i64: 1, 4, 324>}, {pipeline_mode = #tpu.pipeline_mode<synchronous>, transform_indices = @transform_1, window_bounds = array<i64: 2, 4, 36>}, {pipeline_mode = #tpu.pipeline_mode<synchronous>, transform_indices = @transform_2, window_bounds = array<i64: 2, 4, 1>}, {pipeline_mode = #tpu.pipeline_mode<synchronous>, transform_indices = @transform_3, window_bounds = array<i64: 1, 324>}, {transform_indices = @transform_4, window_bounds = array<i64: 1, 4, 192>}]} {
    %cst = arith.constant 0.000000e+00 : f32
    %0 = vector.broadcast %cst : f32 to vector<4x128xf32>
    %c0 = arith.constant 0 : index
    %c0_0 = arith.constant 0 : index
    %1 = vector.load %arg6[%c0, %c0_0] : memref<4x580xf32, #tpu.memory_space<vmem>>, vector<4x128xf32>
    tpu.vector_store %arg6[%c0, %c0_0], %0 {strides = array<i32>} : memref<4x580xf32, #tpu.memory_space<vmem>>, vector<4x128xf32>,
    %cst_1 = arith.constant 0.000000e+00 : f32
    %2 = vector.broadcast %cst_1 : f32 to vector<4x128xf32>
    %c0_2 = arith.constant 0 : index
    %c452 = arith.constant 452 : index
    %3 = vector.load %arg6[%c0_2, %c452] : memref<4x580xf32, #tpu.memory_space<vmem>>, vector<4x128xf32>
    tpu.vector_store %arg6[%c0_2, %c452], %2 {strides = array<i32>} : memref<4x580xf32, #tpu.memory_space<vmem>>, vector<4x128xf32>,
    %c0_3 = arith.constant 0 : index
    %c0_4 = arith.constant 0 : index
    %c0_5 = arith.constant 0 : index
    %4 = vector.load %arg1[%c0_3, %c0_4, %c0_5] : memref<1x4x324xf32, #tpu.memory_space<vmem>>, vector<1x4x324xf32>
    %5 = vector.shape_cast %4 : vector<1x4x324xf32> to vector<4x324xf32>
    %c0_6 = arith.constant 0 : index
    %c128 = arith.constant 128 : index
    %6 = vector.load %arg6[%c0_6, %c128] : memref<4x580xf32, #tpu.memory_space<vmem>>, vector<4x324xf32>
    tpu.vector_store %arg6[%c0_6, %c128], %5 {strides = array<i32>} : memref<4x580xf32, #tpu.memory_space<vmem>>, vector<4x324xf32>,
    %c0_7 = arith.constant 0 : index
    %c109 = arith.constant 109 : index
    %7 = vector.load %arg6[%c0_7, %c109] : memref<4x580xf32, #tpu.memory_space<vmem>>, vector<4x324xf32>
    %c0_8 = arith.constant 0 : index
    %c0_9 = arith.constant 0 : index
    %8 = vector.load %arg7[%c0_8, %c0_9] : memref<36x324xf32, #tpu.memory_space<vmem>>, vector<4x324xf32>
    tpu.vector_store %arg7[%c0_8, %c0_9], %7 {strides = array<i32>} : memref<36x324xf32, #tpu.memory_space<vmem>>, vector<4x324xf32>,
    %c0_10 = arith.constant 0 : index
    %c110 = arith.constant 110 : index
    %9 = vector.load %arg6[%c0_10, %c110] : memref<4x580xf32, #tpu.memory_space<vmem>>, vector<4x324xf32>
    %c4 = arith.constant 4 : index
    %c0_11 = arith.constant 0 : index
    %10 = vector.load %arg7[%c4, %c0_11] : memref<36x324xf32, #tpu.memory_space<vmem>>, vector<4x324xf32>
    tpu.vector_store %arg7[%c4, %c0_11], %9 {strides = array<i32>} : memref<36x324xf32, #tpu.memory_space<vmem>>, vector<4x324xf32>,
    %c0_12 = arith.constant 0 : index
    %c111 = arith.constant 111 : index
    %11 = vector.load %arg6[%c0_12, %c111] : memref<4x580xf32, #tpu.memory_space<vmem>>, vector<4x324xf32>
    %c8 = arith.constant 8 : index
    %c0_13 = arith.constant 0 : index
    %12 = vector.load %arg7[%c8, %c0_13] : memref<36x324xf32, #tpu.memory_space<vmem>>, vector<4x324xf32>
    tpu.vector_store %arg7[%c8, %c0_13], %11 {strides = array<i32>} : memref<36x324xf32, #tpu.memory_space<vmem>>, vector<4x324xf32>,
    %c0_14 = arith.constant 0 : index
    %c127 = arith.constant 127 : index
    %13 = vector.load %arg6[%c0_14, %c127] : memref<4x580xf32, #tpu.memory_space<vmem>>, vector<4x324xf32>
    %c12 = arith.constant 12 : index
    %c0_15 = arith.constant 0 : index
    %14 = vector.load %arg7[%c12, %c0_15] : memref<36x324xf32, #tpu.memory_space<vmem>>, vector<4x324xf32>
    tpu.vector_store %arg7[%c12, %c0_15], %13 {strides = array<i32>} : memref<36x324xf32, #tpu.memory_space<vmem>>, vector<4x324xf32>,
    %c0_16 = arith.constant 0 : index
    %c128_17 = arith.constant 128 : index
    %15 = vector.load %arg6[%c0_16, %c128_17] : memref<4x580xf32, #tpu.memory_space<vmem>>, vector<4x324xf32>
    %c16 = arith.constant 16 : index
    %c0_18 = arith.constant 0 : index
    %16 = vector.load %arg7[%c16, %c0_18] : memref<36x324xf32, #tpu.memory_space<vmem>>, vector<4x324xf32>
    tpu.vector_store %arg7[%c16, %c0_18], %15 {strides = array<i32>} : memref<36x324xf32, #tpu.memory_space<vmem>>, vector<4x324xf32>,
    %c0_19 = arith.constant 0 : index
    %c129 = arith.constant 129 : index
    %17 = vector.load %arg6[%c0_19, %c129] : memref<4x580xf32, #tpu.memory_space<vmem>>, vector<4x324xf32>
    %c20 = arith.constant 20 : index
    %c0_20 = arith.constant 0 : index
    %18 = vector.load %arg7[%c20, %c0_20] : memref<36x324xf32, #tpu.memory_space<vmem>>, vector<4x324xf32>
    tpu.vector_store %arg7[%c20, %c0_20], %17 {strides = array<i32>} : memref<36x324xf32, #tpu.memory_space<vmem>>, vector<4x324xf32>,
    %c0_21 = arith.constant 0 : index
    %c145 = arith.constant 145 : index
    %19 = vector.load %arg6[%c0_21, %c145] : memref<4x580xf32, #tpu.memory_space<vmem>>, vector<4x324xf32>
    %c24 = arith.constant 24 : index
    %c0_22 = arith.constant 0 : index
    %20 = vector.load %arg7[%c24, %c0_22] : memref<36x324xf32, #tpu.memory_space<vmem>>, vector<4x324xf32>
    tpu.vector_store %arg7[%c24, %c0_22], %19 {strides = array<i32>} : memref<36x324xf32, #tpu.memory_space<vmem>>, vector<4x324xf32>,
    %c0_23 = arith.constant 0 : index
    %c146 = arith.constant 146 : index
    %21 = vector.load %arg6[%c0_23, %c146] : memref<4x580xf32, #tpu.memory_space<vmem>>, vector<4x324xf32>
    %c28 = arith.constant 28 : index
    %c0_24 = arith.constant 0 : index
    %22 = vector.load %arg7[%c28, %c0_24] : memref<36x324xf32, #tpu.memory_space<vmem>>, vector<4x324xf32>
    tpu.vector_store %arg7[%c28, %c0_24], %21 {strides = array<i32>} : memref<36x324xf32, #tpu.memory_space<vmem>>, vector<4x324xf32>,
    %c0_25 = arith.constant 0 : index
    %c147 = arith.constant 147 : index
    %23 = vector.load %arg6[%c0_25, %c147] : memref<4x580xf32, #tpu.memory_space<vmem>>, vector<4x324xf32>
    %c32 = arith.constant 32 : index
    %c0_26 = arith.constant 0 : index
    %24 = vector.load %arg7[%c32, %c0_26] : memref<36x324xf32, #tpu.memory_space<vmem>>, vector<4x324xf32>
    tpu.vector_store %arg7[%c32, %c0_26], %23 {strides = array<i32>} : memref<36x324xf32, #tpu.memory_space<vmem>>, vector<4x324xf32>,
    %c0_27 = arith.constant 0 : index
    %c0_28 = arith.constant 0 : index
    %c0_29 = arith.constant 0 : index
    %25 = vector.load %arg2[%c0_27, %c0_28, %c0_29] : memref<2x4x36xf32, #tpu.memory_space<vmem>>, vector<1x4x36xf32>
    %26 = vector.shape_cast %25 : vector<1x4x36xf32> to vector<4x36xf32>
    %c0_30 = arith.constant 0 : index
    %c0_31 = arith.constant 0 : index
    %27 = vector.load %arg7[%c0_30, %c0_31] : memref<36x324xf32, #tpu.memory_space<vmem>>, vector<36x324xf32>
    %cst_32 = arith.constant dense<0.000000e+00> : vector<4x324xf32>
    %28 = tpu.matmul %26, %27, %cst_32 {dimension_numbers = #tpu.dot_dimension_numbers<[1], [0], [0], [1], [0, 0, 1, 1], [], []>} : vector<4x36xf32>, vector<36x324xf32>, vector<4x324xf32> -> vector<4x324xf32>
    %c0_33 = arith.constant 0 : index
    %c0_34 = arith.constant 0 : index
    %c0_35 = arith.constant 0 : index
    %29 = vector.load %arg3[%c0_33, %c0_34, %c0_35] : memref<2x4x1xf32, #tpu.memory_space<vmem>>, vector<1x4x1xf32>
    %30 = vector.shape_cast %29 : vector<1x4x1xf32> to vector<4x1xf32>
    %31 = vector.broadcast %30 : vector<4x1xf32> to vector<4x324xf32>
    %32 = arith.addf %28, %31 : vector<4x324xf32>
    %cst_36 = arith.constant 0.000000e+00 : f32
    %33 = vector.broadcast %cst_36 : f32 to vector<4x324xf32>
    %34 = arith.maximumf %32, %33 : vector<4x324xf32>
    %c0_37 = arith.constant 0 : index
    %c0_38 = arith.constant 0 : index
    %35 = vector.load %arg4[%c0_37, %c0_38] : memref<1x324xf32, #tpu.memory_space<vmem>>, vector<1x324xf32>
    %36 = vector.broadcast %35 : vector<1x324xf32> to vector<4x324xf32>
    %37 = arith.mulf %34, %36 : vector<4x324xf32>
    %c0_39 = arith.constant 0 : index
    %c128_40 = arith.constant 128 : index
    %38 = vector.load %arg6[%c0_39, %c128_40] : memref<4x580xf32, #tpu.memory_space<vmem>>, vector<4x324xf32>
    tpu.vector_store %arg6[%c0_39, %c128_40], %37 {strides = array<i32>} : memref<4x580xf32, #tpu.memory_space<vmem>>, vector<4x324xf32>,
    %c0_41 = arith.constant 0 : index
    %c109_42 = arith.constant 109 : index
    %39 = vector.load %arg6[%c0_41, %c109_42] : memref<4x580xf32, #tpu.memory_space<vmem>>, vector<4x324xf32>
    %c0_43 = arith.constant 0 : index
    %c0_44 = arith.constant 0 : index
    %40 = vector.load %arg7[%c0_43, %c0_44] : memref<36x324xf32, #tpu.memory_space<vmem>>, vector<4x324xf32>
    tpu.vector_store %arg7[%c0_43, %c0_44], %39 {strides = array<i32>} : memref<36x324xf32, #tpu.memory_space<vmem>>, vector<4x324xf32>,
    %c0_45 = arith.constant 0 : index
    %c110_46 = arith.constant 110 : index
    %41 = vector.load %arg6[%c0_45, %c110_46] : memref<4x580xf32, #tpu.memory_space<vmem>>, vector<4x324xf32>
    %c4_47 = arith.constant 4 : index
    %c0_48 = arith.constant 0 : index
    %42 = vector.load %arg7[%c4_47, %c0_48] : memref<36x324xf32, #tpu.memory_space<vmem>>, vector<4x324xf32>
    tpu.vector_store %arg7[%c4_47, %c0_48], %41 {strides = array<i32>} : memref<36x324xf32, #tpu.memory_space<vmem>>, vector<4x324xf32>,
    %c0_49 = arith.constant 0 : index
    %c111_50 = arith.constant 111 : index
    %43 = vector.load %arg6[%c0_49, %c111_50] : memref<4x580xf32, #tpu.memory_space<vmem>>, vector<4x324xf32>
    %c8_51 = arith.constant 8 : index
    %c0_52 = arith.constant 0 : index
    %44 = vector.load %arg7[%c8_51, %c0_52] : memref<36x324xf32, #tpu.memory_space<vmem>>, vector<4x324xf32>
    tpu.vector_store %arg7[%c8_51, %c0_52], %43 {strides = array<i32>} : memref<36x324xf32, #tpu.memory_space<vmem>>, vector<4x324xf32>,
    %c0_53 = arith.constant 0 : index
    %c127_54 = arith.constant 127 : index
    %45 = vector.load %arg6[%c0_53, %c127_54] : memref<4x580xf32, #tpu.memory_space<vmem>>, vector<4x324xf32>
    %c12_55 = arith.constant 12 : index
    %c0_56 = arith.constant 0 : index
    %46 = vector.load %arg7[%c12_55, %c0_56] : memref<36x324xf32, #tpu.memory_space<vmem>>, vector<4x324xf32>
    tpu.vector_store %arg7[%c12_55, %c0_56], %45 {strides = array<i32>} : memref<36x324xf32, #tpu.memory_space<vmem>>, vector<4x324xf32>,
    %c0_57 = arith.constant 0 : index
    %c128_58 = arith.constant 128 : index
    %47 = vector.load %arg6[%c0_57, %c128_58] : memref<4x580xf32, #tpu.memory_space<vmem>>, vector<4x324xf32>
    %c16_59 = arith.constant 16 : index
    %c0_60 = arith.constant 0 : index
    %48 = vector.load %arg7[%c16_59, %c0_60] : memref<36x324xf32, #tpu.memory_space<vmem>>, vector<4x324xf32>
    tpu.vector_store %arg7[%c16_59, %c0_60], %47 {strides = array<i32>} : memref<36x324xf32, #tpu.memory_space<vmem>>, vector<4x324xf32>,
    %c0_61 = arith.constant 0 : index
    %c129_62 = arith.constant 129 : index
    %49 = vector.load %arg6[%c0_61, %c129_62] : memref<4x580xf32, #tpu.memory_space<vmem>>, vector<4x324xf32>
    %c20_63 = arith.constant 20 : index
    %c0_64 = arith.constant 0 : index
    %50 = vector.load %arg7[%c20_63, %c0_64] : memref<36x324xf32, #tpu.memory_space<vmem>>, vector<4x324xf32>
    tpu.vector_store %arg7[%c20_63, %c0_64], %49 {strides = array<i32>} : memref<36x324xf32, #tpu.memory_space<vmem>>, vector<4x324xf32>,
    %c0_65 = arith.constant 0 : index
    %c145_66 = arith.constant 145 : index
    %51 = vector.load %arg6[%c0_65, %c145_66] : memref<4x580xf32, #tpu.memory_space<vmem>>, vector<4x324xf32>
    %c24_67 = arith.constant 24 : index
    %c0_68 = arith.constant 0 : index
    %52 = vector.load %arg7[%c24_67, %c0_68] : memref<36x324xf32, #tpu.memory_space<vmem>>, vector<4x324xf32>
    tpu.vector_store %arg7[%c24_67, %c0_68], %51 {strides = array<i32>} : memref<36x324xf32, #tpu.memory_space<vmem>>, vector<4x324xf32>,
    %c0_69 = arith.constant 0 : index
    %c146_70 = arith.constant 146 : index
    %53 = vector.load %arg6[%c0_69, %c146_70] : memref<4x580xf32, #tpu.memory_space<vmem>>, vector<4x324xf32>
    %c28_71 = arith.constant 28 : index
    %c0_72 = arith.constant 0 : index
    %54 = vector.load %arg7[%c28_71, %c0_72] : memref<36x324xf32, #tpu.memory_space<vmem>>, vector<4x324xf32>
    tpu.vector_store %arg7[%c28_71, %c0_72], %53 {strides = array<i32>} : memref<36x324xf32, #tpu.memory_space<vmem>>, vector<4x324xf32>,
    %c0_73 = arith.constant 0 : index
    %c147_74 = arith.constant 147 : index
    %55 = vector.load %arg6[%c0_73, %c147_74] : memref<4x580xf32, #tpu.memory_space<vmem>>, vector<4x324xf32>
    %c32_75 = arith.constant 32 : index
    %c0_76 = arith.constant 0 : index
    %56 = vector.load %arg7[%c32_75, %c0_76] : memref<36x324xf32, #tpu.memory_space<vmem>>, vector<4x324xf32>
    tpu.vector_store %arg7[%c32_75, %c0_76], %55 {strides = array<i32>} : memref<36x324xf32, #tpu.memory_space<vmem>>, vector<4x324xf32>,
    %c1 = arith.constant 1 : index
    %c0_77 = arith.constant 0 : index
    %c0_78 = arith.constant 0 : index
    %57 = vector.load %arg2[%c1, %c0_77, %c0_78] : memref<2x4x36xf32, #tpu.memory_space<vmem>>, vector<1x4x36xf32>
    %58 = vector.shape_cast %57 : vector<1x4x36xf32> to vector<4x36xf32>
    %c0_79 = arith.constant 0 : index
    %c0_80 = arith.constant 0 : index
    %59 = vector.load %arg7[%c0_79, %c0_80] : memref<36x324xf32, #tpu.memory_space<vmem>>, vector<36x324xf32>
    %cst_81 = arith.constant dense<0.000000e+00> : vector<4x324xf32>
    %60 = tpu.matmul %58, %59, %cst_81 {dimension_numbers = #tpu.dot_dimension_numbers<[1], [0], [0], [1], [0, 0, 1, 1], [], []>} : vector<4x36xf32>, vector<36x324xf32>, vector<4x324xf32> -> vector<4x324xf32>
    %c1_82 = arith.constant 1 : index
    %c0_83 = arith.constant 0 : index
    %c0_84 = arith.constant 0 : index
    %61 = vector.load %arg3[%c1_82, %c0_83, %c0_84] : memref<2x4x1xf32, #tpu.memory_space<vmem>>, vector<1x4x1xf32>
    %62 = vector.shape_cast %61 : vector<1x4x1xf32> to vector<4x1xf32>
    %63 = vector.broadcast %62 : vector<4x1xf32> to vector<4x324xf32>
    %64 = arith.addf %60, %63 : vector<4x324xf32>
    %cst_85 = arith.constant 0.000000e+00 : f32
    %65 = vector.broadcast %cst_85 : f32 to vector<4x324xf32>
    %66 = arith.maximumf %64, %65 : vector<4x324xf32>
    %67 = vector.extract_strided_slice %66 {offsets = [0, 21], sizes = [4, 12], strides = [1, 1]} : vector<4x324xf32> to vector<4x12xf32>
    %c0_86 = arith.constant 0 : index
    %c0_87 = arith.constant 0 : index
    %c27 = arith.constant 27 : index
    %68 = vector.load %arg1[%c0_86, %c0_87, %c27] : memref<1x4x324xf32, #tpu.memory_space<vmem>>, vector<1x4x1xf32>
    %69 = vector.shape_cast %68 : vector<1x4x1xf32> to vector<4x1xf32>
    %70 = vector.broadcast %69 : vector<4x1xf32> to vector<4x12xf32>
    %71 = arith.addf %67, %70 : vector<4x12xf32>
    %c0_88 = arith.constant 0 : index
    %c0_89 = arith.constant 0 : index
    %c0_90 = arith.constant 0 : index
    %72 = vector.load %arg5[%c0_88, %c0_89, %c0_90] : memref<1x4x192xf32, #tpu.memory_space<vmem>>, vector<1x4x12xf32>
    %73 = vector.shape_cast %72 : vector<1x4x12xf32> to vector<4x12xf32>
    %74 = vector.shape_cast %71 : vector<4x12xf32> to vector<1x4x12xf32>
    tpu.vector_store %arg5[%c0_88, %c0_89, %c0_90], %74 {strides = array<i32>} : memref<1x4x192xf32, #tpu.memory_space<vmem>>, vector<1x4x12xf32>,
    %75 = vector.extract_strided_slice %66 {offsets = [0, 39], sizes = [4, 12], strides = [1, 1]} : vector<4x324xf32> to vector<4x12xf32>
    %c0_91 = arith.constant 0 : index
    %c0_92 = arith.constant 0 : index
    %c45 = arith.constant 45 : index
    %76 = vector.load %arg1[%c0_91, %c0_92, %c45] : memref<1x4x324xf32, #tpu.memory_space<vmem>>, vector<1x4x1xf32>
    %77 = vector.shape_cast %76 : vector<1x4x1xf32> to vector<4x1xf32>
    %78 = vector.broadcast %77 : vector<4x1xf32> to vector<4x12xf32>
    %79 = arith.addf %75, %78 : vector<4x12xf32>
    %c0_93 = arith.constant 0 : index
    %c0_94 = arith.constant 0 : index
    %c12_95 = arith.constant 12 : index
    %80 = vector.load %arg5[%c0_93, %c0_94, %c12_95] : memref<1x4x192xf32, #tpu.memory_space<vmem>>, vector<1x4x12xf32>
    %81 = vector.shape_cast %80 : vector<1x4x12xf32> to vector<4x12xf32>
    %82 = vector.shape_cast %79 : vector<4x12xf32> to vector<1x4x12xf32>
    tpu.vector_store %arg5[%c0_93, %c0_94, %c12_95], %82 {strides = array<i32>} : memref<1x4x192xf32, #tpu.memory_space<vmem>>, vector<1x4x12xf32>,
    %83 = vector.extract_strided_slice %66 {offsets = [0, 57], sizes = [4, 12], strides = [1, 1]} : vector<4x324xf32> to vector<4x12xf32>
    %c0_96 = arith.constant 0 : index
    %c0_97 = arith.constant 0 : index
    %c63 = arith.constant 63 : index
    %84 = vector.load %arg1[%c0_96, %c0_97, %c63] : memref<1x4x324xf32, #tpu.memory_space<vmem>>, vector<1x4x1xf32>
    %85 = vector.shape_cast %84 : vector<1x4x1xf32> to vector<4x1xf32>
    %86 = vector.broadcast %85 : vector<4x1xf32> to vector<4x12xf32>
    %87 = arith.addf %83, %86 : vector<4x12xf32>
    %c0_98 = arith.constant 0 : index
    %c0_99 = arith.constant 0 : index
    %c24_100 = arith.constant 24 : index
    %88 = vector.load %arg5[%c0_98, %c0_99, %c24_100] : memref<1x4x192xf32, #tpu.memory_space<vmem>>, vector<1x4x12xf32>
    %89 = vector.shape_cast %88 : vector<1x4x12xf32> to vector<4x12xf32>
    %90 = vector.shape_cast %87 : vector<4x12xf32> to vector<1x4x12xf32>
    tpu.vector_store %arg5[%c0_98, %c0_99, %c24_100], %90 {strides = array<i32>} : memref<1x4x192xf32, #tpu.memory_space<vmem>>, vector<1x4x12xf32>,
    %91 = vector.extract_strided_slice %66 {offsets = [0, 75], sizes = [4, 12], strides = [1, 1]} : vector<4x324xf32> to vector<4x12xf32>
    %c0_101 = arith.constant 0 : index
    %c0_102 = arith.constant 0 : index
    %c81 = arith.constant 81 : index
    %92 = vector.load %arg1[%c0_101, %c0_102, %c81] : memref<1x4x324xf32, #tpu.memory_space<vmem>>, vector<1x4x1xf32>
    %93 = vector.shape_cast %92 : vector<1x4x1xf32> to vector<4x1xf32>
    %94 = vector.broadcast %93 : vector<4x1xf32> to vector<4x12xf32>
    %95 = arith.addf %91, %94 : vector<4x12xf32>
    %c0_103 = arith.constant 0 : index
    %c0_104 = arith.constant 0 : index
    %c36 = arith.constant 36 : index
    %96 = vector.load %arg5[%c0_103, %c0_104, %c36] : memref<1x4x192xf32, #tpu.memory_space<vmem>>, vector<1x4x12xf32>
    %97 = vector.shape_cast %96 : vector<1x4x12xf32> to vector<4x12xf32>
    %98 = vector.shape_cast %95 : vector<4x12xf32> to vector<1x4x12xf32>
    tpu.vector_store %arg5[%c0_103, %c0_104, %c36], %98 {strides = array<i32>} : memref<1x4x192xf32, #tpu.memory_space<vmem>>, vector<1x4x12xf32>,
    %99 = vector.extract_strided_slice %66 {offsets = [0, 93], sizes = [4, 12], strides = [1, 1]} : vector<4x324xf32> to vector<4x12xf32>
    %c0_105 = arith.constant 0 : index
    %c0_106 = arith.constant 0 : index
    %c99 = arith.constant 99 : index
    %100 = vector.load %arg1[%c0_105, %c0_106, %c99] : memref<1x4x324xf32, #tpu.memory_space<vmem>>, vector<1x4x1xf32>
    %101 = vector.shape_cast %100 : vector<1x4x1xf32> to vector<4x1xf32>
    %102 = vector.broadcast %101 : vector<4x1xf32> to vector<4x12xf32>
    %103 = arith.addf %99, %102 : vector<4x12xf32>
    %c0_107 = arith.constant 0 : index
    %c0_108 = arith.constant 0 : index
    %c48 = arith.constant 48 : index
    %104 = vector.load %arg5[%c0_107, %c0_108, %c48] : memref<1x4x192xf32, #tpu.memory_space<vmem>>, vector<1x4x12xf32>
    %105 = vector.shape_cast %104 : vector<1x4x12xf32> to vector<4x12xf32>
    %106 = vector.shape_cast %103 : vector<4x12xf32> to vector<1x4x12xf32>
    tpu.vector_store %arg5[%c0_107, %c0_108, %c48], %106 {strides = array<i32>} : memref<1x4x192xf32, #tpu.memory_space<vmem>>, vector<1x4x12xf32>,
    %107 = vector.extract_strided_slice %66 {offsets = [0, 111], sizes = [4, 12], strides = [1, 1]} : vector<4x324xf32> to vector<4x12xf32>
    %c0_109 = arith.constant 0 : index
    %c0_110 = arith.constant 0 : index
    %c117 = arith.constant 117 : index
    %108 = vector.load %arg1[%c0_109, %c0_110, %c117] : memref<1x4x324xf32, #tpu.memory_space<vmem>>, vector<1x4x1xf32>
    %109 = vector.shape_cast %108 : vector<1x4x1xf32> to vector<4x1xf32>
    %110 = vector.broadcast %109 : vector<4x1xf32> to vector<4x12xf32>
    %111 = arith.addf %107, %110 : vector<4x12xf32>
    %c0_111 = arith.constant 0 : index
    %c0_112 = arith.constant 0 : index
    %c60 = arith.constant 60 : index
    %112 = vector.load %arg5[%c0_111, %c0_112, %c60] : memref<1x4x192xf32, #tpu.memory_space<vmem>>, vector<1x4x12xf32>
    %113 = vector.shape_cast %112 : vector<1x4x12xf32> to vector<4x12xf32>
    %114 = vector.shape_cast %111 : vector<4x12xf32> to vector<1x4x12xf32>
    tpu.vector_store %arg5[%c0_111, %c0_112, %c60], %114 {strides = array<i32>} : memref<1x4x192xf32, #tpu.memory_space<vmem>>, vector<1x4x12xf32>,
    %115 = vector.extract_strided_slice %66 {offsets = [0, 129], sizes = [4, 12], strides = [1, 1]} : vector<4x324xf32> to vector<4x12xf32>
    %c0_113 = arith.constant 0 : index
    %c0_114 = arith.constant 0 : index
    %c135 = arith.constant 135 : index
    %116 = vector.load %arg1[%c0_113, %c0_114, %c135] : memref<1x4x324xf32, #tpu.memory_space<vmem>>, vector<1x4x1xf32>
    %117 = vector.shape_cast %116 : vector<1x4x1xf32> to vector<4x1xf32>
    %118 = vector.broadcast %117 : vector<4x1xf32> to vector<4x12xf32>
    %119 = arith.addf %115, %118 : vector<4x12xf32>
    %c0_115 = arith.constant 0 : index
    %c0_116 = arith.constant 0 : index
    %c72 = arith.constant 72 : index
    %120 = vector.load %arg5[%c0_115, %c0_116, %c72] : memref<1x4x192xf32, #tpu.memory_space<vmem>>, vector<1x4x12xf32>
    %121 = vector.shape_cast %120 : vector<1x4x12xf32> to vector<4x12xf32>
    %122 = vector.shape_cast %119 : vector<4x12xf32> to vector<1x4x12xf32>
    tpu.vector_store %arg5[%c0_115, %c0_116, %c72], %122 {strides = array<i32>} : memref<1x4x192xf32, #tpu.memory_space<vmem>>, vector<1x4x12xf32>,
    %123 = vector.extract_strided_slice %66 {offsets = [0, 147], sizes = [4, 12], strides = [1, 1]} : vector<4x324xf32> to vector<4x12xf32>
    %c0_117 = arith.constant 0 : index
    %c0_118 = arith.constant 0 : index
    %c153 = arith.constant 153 : index
    %124 = vector.load %arg1[%c0_117, %c0_118, %c153] : memref<1x4x324xf32, #tpu.memory_space<vmem>>, vector<1x4x1xf32>
    %125 = vector.shape_cast %124 : vector<1x4x1xf32> to vector<4x1xf32>
    %126 = vector.broadcast %125 : vector<4x1xf32> to vector<4x12xf32>
    %127 = arith.addf %123, %126 : vector<4x12xf32>
    %c0_119 = arith.constant 0 : index
    %c0_120 = arith.constant 0 : index
    %c84 = arith.constant 84 : index
    %128 = vector.load %arg5[%c0_119, %c0_120, %c84] : memref<1x4x192xf32, #tpu.memory_space<vmem>>, vector<1x4x12xf32>
    %129 = vector.shape_cast %128 : vector<1x4x12xf32> to vector<4x12xf32>
    %130 = vector.shape_cast %127 : vector<4x12xf32> to vector<1x4x12xf32>
    tpu.vector_store %arg5[%c0_119, %c0_120, %c84], %130 {strides = array<i32>} : memref<1x4x192xf32, #tpu.memory_space<vmem>>, vector<1x4x12xf32>,
    %131 = vector.extract_strided_slice %66 {offsets = [0, 165], sizes = [4, 12], strides = [1, 1]} : vector<4x324xf32> to vector<4x12xf32>
    %c0_121 = arith.constant 0 : index
    %c0_122 = arith.constant 0 : index
    %c171 = arith.constant 171 : index
    %132 = vector.load %arg1[%c0_121, %c0_122, %c171] : memref<1x4x324xf32, #tpu.memory_space<vmem>>, vector<1x4x1xf32>
    %133 = vector.shape_cast %132 : vector<1x4x1xf32> to vector<4x1xf32>
    %134 = vector.broadcast %133 : vector<4x1xf32> to vector<4x12xf32>
    %135 = arith.addf %131, %134 : vector<4x12xf32>
    %c0_123 = arith.constant 0 : index
    %c0_124 = arith.constant 0 : index
    %c96 = arith.constant 96 : index
    %136 = vector.load %arg5[%c0_123, %c0_124, %c96] : memref<1x4x192xf32, #tpu.memory_space<vmem>>, vector<1x4x12xf32>
    %137 = vector.shape_cast %136 : vector<1x4x12xf32> to vector<4x12xf32>
    %138 = vector.shape_cast %135 : vector<4x12xf32> to vector<1x4x12xf32>
    tpu.vector_store %arg5[%c0_123, %c0_124, %c96], %138 {strides = array<i32>} : memref<1x4x192xf32, #tpu.memory_space<vmem>>, vector<1x4x12xf32>,
    %139 = vector.extract_strided_slice %66 {offsets = [0, 183], sizes = [4, 12], strides = [1, 1]} : vector<4x324xf32> to vector<4x12xf32>
    %c0_125 = arith.constant 0 : index
    %c0_126 = arith.constant 0 : index
    %c189 = arith.constant 189 : index
    %140 = vector.load %arg1[%c0_125, %c0_126, %c189] : memref<1x4x324xf32, #tpu.memory_space<vmem>>, vector<1x4x1xf32>
    %141 = vector.shape_cast %140 : vector<1x4x1xf32> to vector<4x1xf32>
    %142 = vector.broadcast %141 : vector<4x1xf32> to vector<4x12xf32>
    %143 = arith.addf %139, %142 : vector<4x12xf32>
    %c0_127 = arith.constant 0 : index
    %c0_128 = arith.constant 0 : index
    %c108 = arith.constant 108 : index
    %144 = vector.load %arg5[%c0_127, %c0_128, %c108] : memref<1x4x192xf32, #tpu.memory_space<vmem>>, vector<1x4x12xf32>
    %145 = vector.shape_cast %144 : vector<1x4x12xf32> to vector<4x12xf32>
    %146 = vector.shape_cast %143 : vector<4x12xf32> to vector<1x4x12xf32>
    tpu.vector_store %arg5[%c0_127, %c0_128, %c108], %146 {strides = array<i32>} : memref<1x4x192xf32, #tpu.memory_space<vmem>>, vector<1x4x12xf32>,
    %147 = vector.extract_strided_slice %66 {offsets = [0, 201], sizes = [4, 12], strides = [1, 1]} : vector<4x324xf32> to vector<4x12xf32>
    %c0_129 = arith.constant 0 : index
    %c0_130 = arith.constant 0 : index
    %c207 = arith.constant 207 : index
    %148 = vector.load %arg1[%c0_129, %c0_130, %c207] : memref<1x4x324xf32, #tpu.memory_space<vmem>>, vector<1x4x1xf32>
    %149 = vector.shape_cast %148 : vector<1x4x1xf32> to vector<4x1xf32>
    %150 = vector.broadcast %149 : vector<4x1xf32> to vector<4x12xf32>
    %151 = arith.addf %147, %150 : vector<4x12xf32>
    %c0_131 = arith.constant 0 : index
    %c0_132 = arith.constant 0 : index
    %c120 = arith.constant 120 : index
    %152 = vector.load %arg5[%c0_131, %c0_132, %c120] : memref<1x4x192xf32, #tpu.memory_space<vmem>>, vector<1x4x12xf32>
    %153 = vector.shape_cast %152 : vector<1x4x12xf32> to vector<4x12xf32>
    %154 = vector.shape_cast %151 : vector<4x12xf32> to vector<1x4x12xf32>
    tpu.vector_store %arg5[%c0_131, %c0_132, %c120], %154 {strides = array<i32>} : memref<1x4x192xf32, #tpu.memory_space<vmem>>, vector<1x4x12xf32>,
    %155 = vector.extract_strided_slice %66 {offsets = [0, 219], sizes = [4, 12], strides = [1, 1]} : vector<4x324xf32> to vector<4x12xf32>
    %c0_133 = arith.constant 0 : index
    %c0_134 = arith.constant 0 : index
    %c225 = arith.constant 225 : index
    %156 = vector.load %arg1[%c0_133, %c0_134, %c225] : memref<1x4x324xf32, #tpu.memory_space<vmem>>, vector<1x4x1xf32>
    %157 = vector.shape_cast %156 : vector<1x4x1xf32> to vector<4x1xf32>
    %158 = vector.broadcast %157 : vector<4x1xf32> to vector<4x12xf32>
    %159 = arith.addf %155, %158 : vector<4x12xf32>
    %c0_135 = arith.constant 0 : index
    %c0_136 = arith.constant 0 : index
    %c132 = arith.constant 132 : index
    %160 = vector.load %arg5[%c0_135, %c0_136, %c132] : memref<1x4x192xf32, #tpu.memory_space<vmem>>, vector<1x4x12xf32>
    %161 = vector.shape_cast %160 : vector<1x4x12xf32> to vector<4x12xf32>
    %162 = vector.shape_cast %159 : vector<4x12xf32> to vector<1x4x12xf32>
    tpu.vector_store %arg5[%c0_135, %c0_136, %c132], %162 {strides = array<i32>} : memref<1x4x192xf32, #tpu.memory_space<vmem>>, vector<1x4x12xf32>,
    %163 = vector.extract_strided_slice %66 {offsets = [0, 237], sizes = [4, 12], strides = [1, 1]} : vector<4x324xf32> to vector<4x12xf32>
    %c0_137 = arith.constant 0 : index
    %c0_138 = arith.constant 0 : index
    %c243 = arith.constant 243 : index
    %164 = vector.load %arg1[%c0_137, %c0_138, %c243] : memref<1x4x324xf32, #tpu.memory_space<vmem>>, vector<1x4x1xf32>
    %165 = vector.shape_cast %164 : vector<1x4x1xf32> to vector<4x1xf32>
    %166 = vector.broadcast %165 : vector<4x1xf32> to vector<4x12xf32>
    %167 = arith.addf %163, %166 : vector<4x12xf32>
    %c0_139 = arith.constant 0 : index
    %c0_140 = arith.constant 0 : index
    %c144 = arith.constant 144 : index
    %168 = vector.load %arg5[%c0_139, %c0_140, %c144] : memref<1x4x192xf32, #tpu.memory_space<vmem>>, vector<1x4x12xf32>
    %169 = vector.shape_cast %168 : vector<1x4x12xf32> to vector<4x12xf32>
    %170 = vector.shape_cast %167 : vector<4x12xf32> to vector<1x4x12xf32>
    tpu.vector_store %arg5[%c0_139, %c0_140, %c144], %170 {strides = array<i32>} : memref<1x4x192xf32, #tpu.memory_space<vmem>>, vector<1x4x12xf32>,
    %171 = vector.extract_strided_slice %66 {offsets = [0, 255], sizes = [4, 12], strides = [1, 1]} : vector<4x324xf32> to vector<4x12xf32>
    %c0_141 = arith.constant 0 : index
    %c0_142 = arith.constant 0 : index
    %c261 = arith.constant 261 : index
    %172 = vector.load %arg1[%c0_141, %c0_142, %c261] : memref<1x4x324xf32, #tpu.memory_space<vmem>>, vector<1x4x1xf32>
    %173 = vector.shape_cast %172 : vector<1x4x1xf32> to vector<4x1xf32>
    %174 = vector.broadcast %173 : vector<4x1xf32> to vector<4x12xf32>
    %175 = arith.addf %171, %174 : vector<4x12xf32>
    %c0_143 = arith.constant 0 : index
    %c0_144 = arith.constant 0 : index
    %c156 = arith.constant 156 : index
    %176 = vector.load %arg5[%c0_143, %c0_144, %c156] : memref<1x4x192xf32, #tpu.memory_space<vmem>>, vector<1x4x12xf32>
    %177 = vector.shape_cast %176 : vector<1x4x12xf32> to vector<4x12xf32>
    %178 = vector.shape_cast %175 : vector<4x12xf32> to vector<1x4x12xf32>
    tpu.vector_store %arg5[%c0_143, %c0_144, %c156], %178 {strides = array<i32>} : memref<1x4x192xf32, #tpu.memory_space<vmem>>, vector<1x4x12xf32>,
    %179 = vector.extract_strided_slice %66 {offsets = [0, 273], sizes = [4, 12], strides = [1, 1]} : vector<4x324xf32> to vector<4x12xf32>
    %c0_145 = arith.constant 0 : index
    %c0_146 = arith.constant 0 : index
    %c279 = arith.constant 279 : index
    %180 = vector.load %arg1[%c0_145, %c0_146, %c279] : memref<1x4x324xf32, #tpu.memory_space<vmem>>, vector<1x4x1xf32>
    %181 = vector.shape_cast %180 : vector<1x4x1xf32> to vector<4x1xf32>
    %182 = vector.broadcast %181 : vector<4x1xf32> to vector<4x12xf32>
    %183 = arith.addf %179, %182 : vector<4x12xf32>
    %c0_147 = arith.constant 0 : index
    %c0_148 = arith.constant 0 : index
    %c168 = arith.constant 168 : index
    %184 = vector.load %arg5[%c0_147, %c0_148, %c168] : memref<1x4x192xf32, #tpu.memory_space<vmem>>, vector<1x4x12xf32>
    %185 = vector.shape_cast %184 : vector<1x4x12xf32> to vector<4x12xf32>
    %186 = vector.shape_cast %183 : vector<4x12xf32> to vector<1x4x12xf32>
    tpu.vector_store %arg5[%c0_147, %c0_148, %c168], %186 {strides = array<i32>} : memref<1x4x192xf32, #tpu.memory_space<vmem>>, vector<1x4x12xf32>,
    %187 = vector.extract_strided_slice %66 {offsets = [0, 291], sizes = [4, 12], strides = [1, 1]} : vector<4x324xf32> to vector<4x12xf32>
    %c0_149 = arith.constant 0 : index
    %c0_150 = arith.constant 0 : index
    %c297 = arith.constant 297 : index
    %188 = vector.load %arg1[%c0_149, %c0_150, %c297] : memref<1x4x324xf32, #tpu.memory_space<vmem>>, vector<1x4x1xf32>
    %189 = vector.shape_cast %188 : vector<1x4x1xf32> to vector<4x1xf32>
    %190 = vector.broadcast %189 : vector<4x1xf32> to vector<4x12xf32>
    %191 = arith.addf %187, %190 : vector<4x12xf32>
    %c0_151 = arith.constant 0 : index
    %c0_152 = arith.constant 0 : index
    %c180 = arith.constant 180 : index
    %192 = vector.load %arg5[%c0_151, %c0_152, %c180] : memref<1x4x192xf32, #tpu.memory_space<vmem>>, vector<1x4x12xf32>
    %193 = vector.shape_cast %192 : vector<1x4x12xf32> to vector<4x12xf32>
    %194 = vector.shape_cast %191 : vector<4x12xf32> to vector<1x4x12xf32>
    tpu.vector_store %arg5[%c0_151, %c0_152, %c180], %194 {strides = array<i32>} : memref<1x4x192xf32, #tpu.memory_space<vmem>>, vector<1x4x12xf32>,
    return
  }
  func.func @transform_0(%arg0: i32) -> (i32, i32, i32) {
    %c0_i32 = arith.constant 0 : i32
    %c0_i32_0 = arith.constant 0 : i32
    %c0_i32_1 = arith.constant 0 : i32
    return %arg0, %c0_i32, %c0_i32_0 : i32, i32, i32
  }
  func.func @transform_1(%arg0: i32) -> (i32, i32, i32) {
    %c0_i32 = arith.constant 0 : i32
    %c0_i32_0 = arith.constant 0 : i32
    %c0_i32_1 = arith.constant 0 : i32
    %c0_i32_2 = arith.constant 0 : i32
    return %c0_i32, %c0_i32_0, %c0_i32_1 : i32, i32, i32
  }
  func.func @transform_2(%arg0: i32) -> (i32, i32, i32) {
    %c0_i32 = arith.constant 0 : i32
    %c0_i32_0 = arith.constant 0 : i32
    %c0_i32_1 = arith.constant 0 : i32
    %c0_i32_2 = arith.constant 0 : i32
    return %c0_i32, %c0_i32_0, %c0_i32_1 : i32, i32, i32
  }
  func.func @transform_3(%arg0: i32) -> (i32, i32) {
    %c0_i32 = arith.constant 0 : i32
    %c0_i32_0 = arith.constant 0 : i32
    %c0_i32_1 = arith.constant 0 : i32
    return %c0_i32, %c0_i32_0 : i32, i32
  }
  func.func @transform_4(%arg0: i32) -> (i32, i32, i32) {
    %c0_i32 = arith.constant 0 : i32
    %c0_i32_0 = arith.constant 0 : i32
    %c0_i32_1 = arith.constant 0 : i32
    return %arg0, %c0_i32, %c0_i32_0 : i32, i32, i32
  }
}

</mosaic_0001>

<llo_original>
// kernel: tpu_custom_call.1
$region0: #{tpu_custom_call.1}
  #allocation0 [shape = 'u32[]', space=smem, size = 0x4, offset = 0x4, fixed_abs, tag = 'smem constant byte address 0x4 - core index']
  #allocation1 [shape = 'u32[144,128]{1,0:T(1,128)}', space=vmem, size = 0x12000, scoped, tag = 'internal scratch']
  #allocation2 [shape = 'f32[4,580]{1,0:T(4,128)}', space=vmem, size = 0x2800, scoped, tag = 'scratch operand']
  #allocation3 [shape = 'f32[36,324]{1,0:T(8,128)}', space=vmem, size = 0xf000, scoped, tag = 'scratch operand']
  %s0 = inlined_call_operand.hbm [shape: f32[2,4,324], index: 0, kind: input, shape index: {}]
  %s1 = inlined_call_operand.vmem [shape: f32[2,4,36], index: 1, kind: input, shape index: {}]
  %s2 = inlined_call_operand.vmem [shape: f32[2,4,1], index: 2, kind: input, shape index: {}]
  %s3 = inlined_call_operand.vmem [shape: f32[1,324], index: 3, kind: input, shape index: {}]
  %s4 = inlined_call_operand.hbm [shape: f32[2,4,192], index: 4, kind: output, shape index: {}]
  %s5 = sld [smem:[#allocation0]]
  $region53: #{tpu_custom_call.1} parent=0
    _
  %s7 = ssub.s32 1, %s5
  %s8 = scalar_select 0, %s7, %s5
  $region1: #{tpu_custom_call.1} parent=0
    #allocation4 [shape = 'u8[12288]{0}', space=vmem, size = 0x3000, scoped, tag = 'input window, operand 0']
    #allocation5 [shape = 's32[2]{0}', space=sflag, size = 0x8, scoped, tag = 'scoped memory for tpu_custom_call.1']
    #allocation6 [shape = 's32[2]{0}', space=sflag, size = 0x8, scoped, tag = 'scoped memory for tpu_custom_call.1']
    #allocation7 [shape = 'u8[8192]{0}', space=vmem, size = 0x2000, scoped, tag = 'output window, operand 0']
    %9 = vsyncpa [#allocation5], 0
    %s10 = scalar_lea.sflag [#allocation5], 1
    %11 = vsyncpa %s10, 0
    %12 = vsyncpa [#allocation6], 0
    %s13 = scalar_lea.sflag [#allocation6], 1
    %14 = vsyncpa %s13, 0
    loop: start=0, step=1, limit=4
    $region2: #{tpu_custom_call.1} parent=1 // loop_pre_header
      _
    $region3: #{tpu_custom_call.1} parent=1 // loop_header
      %s16 = sphi 0, %s20
      %p17 = scmp.ge.s32.totalorder %s16, 4
      %s26 = sphi 0, %s28
      %s29 = sphi 0, %s26
      %s30 = sphi 0, %s29
      %s46 = sphi 0, %s30
      %s50 = sphi 0, %s50
      %s52 = sphi 0, %s50
      %s53 = sphi 0, %s52
      %s67 = sphi 0, %s53
      %s71 = sphi 0, %s71
      %s73 = sphi 0, %s71
      %s74 = sphi 0, %s73
      %s88 = sphi 0, %s74
      %s92 = sphi 0, %s92
      %s94 = sphi 0, %s92
      %s95 = sphi 0, %s94
      %s109 = sphi 0, %s95
      %s115 = sphi 0, %s117
      %s118 = sphi 0, %s115
      %s119 = sphi 0, %s118
      %s135 = sphi 0, %s119
    $region4: #{tpu_custom_call.1} parent=1 // loop_header_branch
      %19 = sbr.rel (%p17) target = $region8
    $region5: #{tpu_custom_call.1} parent=1 // loop_body
      %s21 = ssub.s32 %s16, 1
      %s22 = ssub.s32 %s16, 2
      %s23 = sadd.s32 %s16, 1
      %s24 = ssub.s32 %s16, %s23
      %p25 = scmp.eq.s32.totalorder %s24, 0
      %s27 = sadd.s32 %s26, 1
      %s28 = scalar_select %p25, %s26, %s27
      %p31 = pneg %p25
      %p32 = scmp.eq.s32.totalorder %s16, 1
      %p33 = por %p31, %p32
      %p34 = scmp.ne.s32.totalorder %s26, %s29
      %p35 = scmp.eq.s32.totalorder %s16, 0
      %p36 = por %p34, %p35
      %p37 = scmp.ne.s32.totalorder %s26, %s29
      %p38 = scmp.eq.s32.totalorder %s21, 1
      %p39 = por %p37, %p38
      %p40 = scmp.ne.s32.totalorder %s29, %s30
      %p41 = scmp.eq.s32.totalorder %s21, 0
      %p42 = por %p40, %p41
      %p43 = scmp.ne.s32.totalorder %s29, %s30
      %p44 = scmp.eq.s32.totalorder %s22, 1
      %p45 = por %p43, %p44
      %p47 = scmp.ne.s32.totalorder %s30, %s46
      %p48 = scmp.eq.s32.totalorder %s22, 0
      %p49 = por %p47, %p48
      %s51 = sadd.s32 %s50, 1
      %p54 = scmp.eq.s32.totalorder %s16, 1
      %p55 = scmp.ne.s32.totalorder %s50, %s52
      %p56 = scmp.eq.s32.totalorder %s16, 0
      %p57 = por %p55, %p56
      %p58 = scmp.ne.s32.totalorder %s50, %s52
      %p59 = scmp.eq.s32.totalorder %s21, 1
      %p60 = por %p58, %p59
      %p61 = scmp.ne.s32.totalorder %s52, %s53
      %p62 = scmp.eq.s32.totalorder %s21, 0
      %p63 = por %p61, %p62
      %p64 = scmp.ne.s32.totalorder %s52, %s53
      %p65 = scmp.eq.s32.totalorder %s22, 1
      %p66 = por %p64, %p65
      %p68 = scmp.ne.s32.totalorder %s53, %s67
      %p69 = scmp.eq.s32.totalorder %s22, 0
      %p70 = por %p68, %p69
      %s72 = sadd.s32 %s71, 1
      %p75 = scmp.eq.s32.totalorder %s16, 1
      %p76 = scmp.ne.s32.totalorder %s71, %s73
      %p77 = scmp.eq.s32.totalorder %s16, 0
      %p78 = por %p76, %p77
      %p79 = scmp.ne.s32.totalorder %s71, %s73
      %p80 = scmp.eq.s32.totalorder %s21, 1
      %p81 = por %p79, %p80
      %p82 = scmp.ne.s32.totalorder %s73, %s74
      %p83 = scmp.eq.s32.totalorder %s21, 0
      %p84 = por %p82, %p83
      %p85 = scmp.ne.s32.totalorder %s73, %s74
      %p86 = scmp.eq.s32.totalorder %s22, 1
      %p87 = por %p85, %p86
      %p89 = scmp.ne.s32.totalorder %s74, %s88
      %p90 = scmp.eq.s32.totalorder %s22, 0
      %p91 = por %p89, %p90
      %s93 = sadd.s32 %s92, 1
      %p96 = scmp.eq.s32.totalorder %s16, 1
      %p97 = scmp.ne.s32.totalorder %s92, %s94
      %p98 = scmp.eq.s32.totalorder %s16, 0
      %p99 = por %p97, %p98
      %p100 = scmp.ne.s32.totalorder %s92, %s94
      %p101 = scmp.eq.s32.totalorder %s21, 1
      %p102 = por %p100, %p101
      %p103 = scmp.ne.s32.totalorder %s94, %s95
      %p104 = scmp.eq.s32.totalorder %s21, 0
      %p105 = por %p103, %p104
      %p106 = scmp.ne.s32.totalorder %s94, %s95
      %p107 = scmp.eq.s32.totalorder %s22, 1
      %p108 = por %p106, %p107
      %p110 = scmp.ne.s32.totalorder %s95, %s109
      %p111 = scmp.eq.s32.totalorder %s22, 0
      %p112 = por %p110, %p111
      %s113 = ssub.s32 %s16, %s23
      %p114 = scmp.eq.s32.totalorder %s113, 0
      %s116 = sadd.s32 %s115, 1
      %s117 = scalar_select %p114, %s115, %s116
      %p120 = pneg %p114
      %p121 = scmp.eq.s32.totalorder %s16, 1
      %p122 = por %p120, %p121
      %p123 = scmp.ne.s32.totalorder %s115, %s118
      %p124 = scmp.eq.s32.totalorder %s16, 0
      %p125 = por %p123, %p124
      %p126 = scmp.ne.s32.totalorder %s115, %s118
      %p127 = scmp.eq.s32.totalorder %s21, 1
      %p128 = por %p126, %p127
      %p129 = scmp.ne.s32.totalorder %s118, %s119
      %p130 = scmp.eq.s32.totalorder %s21, 0
      %p131 = por %p129, %p130
      %p132 = scmp.ne.s32.totalorder %s118, %s119
      %p133 = scmp.eq.s32.totalorder %s22, 1
      %p134 = por %p132, %p133
      %p136 = scmp.ne.s32.totalorder %s119, %s135
      %p137 = scmp.eq.s32.totalorder %s22, 0
      %p138 = por %p136, %p137
      %p139 = scmp.le.s32.totalorder 1, %s16
      %p140 = scmp.lt.s32.totalorder %s16, 3
      %p141 = pnand %p139, %p140
      %p142 = pneg %p141
      // Predicated region
      $region9: #{tpu_custom_call.1} parent=5 // pred_check
        _
      $region10: #{tpu_custom_call.1} parent=5 // pred_check_branch
        %144 = sbr.rel (%p141) target = $region12
      $region11: #{tpu_custom_call.1} parent=5 // pred_region
        %s145 = ssub.s32 %s16, 1
        // Predicated region
        $region13: #{tpu_custom_call.1} parent=11 // pred_check
          %p146 = pneg %p63
        $region14: #{tpu_custom_call.1} parent=11 // pred_check_branch
          %148 = sbr.rel (%p146) target = $region16
        $region15: #{tpu_custom_call.1} parent=11 // pred_region
          _
        $region16: #{tpu_custom_call.1} parent=11 // pred_fallthru
          _
        // Predicated region
        $region17: #{tpu_custom_call.1} parent=11 // pred_check
          %p149 = pneg %p84
        $region18: #{tpu_custom_call.1} parent=11 // pred_check_branch
          %151 = sbr.rel (%p149) target = $region20
        $region19: #{tpu_custom_call.1} parent=11 // pred_region
          _
        $region20: #{tpu_custom_call.1} parent=11 // pred_fallthru
          _
        // Predicated region
        $region21: #{tpu_custom_call.1} parent=11 // pred_check
          %p152 = pneg %p105
        $region22: #{tpu_custom_call.1} parent=11 // pred_check_branch
          %154 = sbr.rel (%p152) target = $region24
        $region23: #{tpu_custom_call.1} parent=11 // pred_region
          _
        $region24: #{tpu_custom_call.1} parent=11 // pred_fallthru
          _
      $region12: #{tpu_custom_call.1} parent=5 // pred_fallthru
        _
      %p155 = scmp.lt.s32.totalorder %s16, 2
      // Predicated region
      $region25: #{tpu_custom_call.1} parent=5 // pred_check
        %p156 = pneg %p155
      $region26: #{tpu_custom_call.1} parent=5 // pred_check_branch
        %158 = sbr.rel (%p156) target = $region28
      $region27: #{tpu_custom_call.1} parent=5 // pred_region
        // Predicated region
        $region29: #{tpu_custom_call.1} parent=27 // pred_check
          %p159 = pneg %p36
        $region30: #{tpu_custom_call.1} parent=27 // pred_check_branch
          %161 = sbr.rel (%p159) target = $region32
        $region31: #{tpu_custom_call.1} parent=27 // pred_region
          %s162 = sand.u32 %s26, 1
          %s163 = scalar_lea.sflag [#allocation5], %s162
          %s164 = sand.u32 %s26, 1
          %s165 = smul.addr %s164, 12
          %s166 = scalar_lea.vmem [#allocation4], %s165
          %s168 = ssub.s32 192, 192
          %169 = vsyncadd %s163, %s168
          %s170 = smul.addr %s16, 3
          %s171 = smul.addr %s170, 64
          %s172 = scalar_lea.hbm %s0, %s171
          %s174 = sshll.u32 %s166, 4
          %s175 = int_to_ptr.vmem [resolvable:$true] %s174
          %177 = dma.hbm_to_vmem [thread:$0]  %s172, 192, %s175, %s163
        $region32: #{tpu_custom_call.1} parent=27 // pred_fallthru
          _
      $region28: #{tpu_custom_call.1} parent=5 // pred_fallthru
        _
      %p178 = scmp.le.s32.totalorder 1, %s16
      %p179 = scmp.lt.s32.totalorder %s16, 3
      %p180 = pnand %p178, %p179
      %p181 = pneg %p180
      // Predicated region
      $region33: #{tpu_custom_call.1} parent=5 // pred_check
        _
      $region34: #{tpu_custom_call.1} parent=5 // pred_check_branch
        %183 = sbr.rel (%p180) target = $region36
      $region35: #{tpu_custom_call.1} parent=5 // pred_region
        %s184 = ssub.s32 %s16, 1
        %s185 = sand.u32 %s29, 1
        %s186 = scalar_lea.sflag [#allocation5], %s185
        %s187 = sand.u32 %s29, 1
        %s188 = smul.addr %s187, 12
        %s189 = scalar_lea.vmem [#allocation4], %s188
        // Predicated region
        $region37: #{tpu_custom_call.1} parent=35 // pred_check
          %p190 = pneg %p42
        $region38: #{tpu_custom_call.1} parent=35 // pred_check_branch
          %192 = sbr.rel (%p190) target = $region40
        $region39: #{tpu_custom_call.1} parent=35 // pred_region
          %193 = dma.done %s186, 192
        $region40: #{tpu_custom_call.1} parent=35 // pred_fallthru
          _
        %s194 = sand.u32 %s29, 1
        %s195 = scalar_lea.sflag [#allocation5], %s194
        %s196 = sand.u32 %s29, 1
        %s197 = smul.addr %s196, 12
        %s198 = scalar_lea.vmem [#allocation4], %s197
        %p199 = pneg %p42
        %p200 = pneg %p39
        %p201 = pneg %p63
        %p202 = pneg %p60
        %p203 = pneg %p84
        %p204 = pneg %p81
        %p205 = pneg %p105
        %p206 = pneg %p102
        %p207 = pneg %p131
        %p208 = pneg %p128
        %s209 = sand.u32 %s118, 1
        %s210 = scalar_lea.sflag [#allocation6], %s209
        %s211 = sand.u32 %s118, 1
        %s212 = smul.addr %s211, 8
        %s213 = scalar_lea.vmem [#allocation7], %s212
        %214 = vst [vmem:[#allocation2] sm:$0xf] 0.0
        %vm215 = vcmask 1044000
        %vm216 = vcmask 556036
        %vm217 = vmor %vm216, %vm215
        %218 = vst.msk [vmem:[#allocation2 + $0xc] sm:$0xff] %vm217, 0.0
        %v219 = vld [vmem:[%s189] sm:$0xff]
        %v220 = vld [vmem:[%s189 + $0x8] sm:$0xf]
        %221 = vst [vmem:[#allocation2 + $0x4] sm:$0xff] %v219
        %vm222 = vcmask 551936
        %223 = vst.msk [vmem:[#allocation2 + $0xc] sm:$0xf] %vm222, %v220
        %v224 = vld [vmem:[#allocation2] sm:$0xff]
        %v225 = vld [vmem:[#allocation2 + $0x8] sm:$0xff]
        %v228 = vcombine.high %v224, %v224
        %v229 = vcombine.high %v225, %v225
        %230 = vrot.lane.b32.xlu0 %v224, 19
        %v231 = vpop.permute.xlu0 %230
        %232 = vrot.lane.b32.xlu0 %v228, 19
        %v233 = vpop.permute.xlu0 %232
        %234 = vrot.lane.b32.xlu0 %v225, 19
        %v235 = vpop.permute.xlu0 %234
        %236 = vrot.lane.b32.xlu0 %v229, 19
        %v237 = vpop.permute.xlu0 %236
        %vm238 = vcmask 154624
        %v239 = vsel %vm238, %v231, %v233
        %v240 = vsel %vm238, %v233, %v235
        %v241 = vsel %vm238, %v235, %v237
        %245 = vst [vmem:[#allocation3] sm:$0xf] %v239
        %246 = vst [vmem:[#allocation3 + $0x8] sm:$0xf] %v240
        %247 = vst.msk [vmem:[#allocation3 + $0x10] sm:$0xf] %vm222, %v241
        %v248 = vld [vmem:[#allocation2] sm:$0xff]
        %v249 = vld [vmem:[#allocation2 + $0x8] sm:$0xff]
        %v252 = vcombine.low %v248, %v248
        %v253 = vcombine.low %v249, %v249
        %254 = vrot.lane.b32.xlu0 %v252, 18
        %v255 = vpop.permute.xlu0 %254
        %256 = vrot.lane.b32.xlu0 %v248, 18
        %v257 = vpop.permute.xlu0 %256
        %258 = vrot.lane.b32.xlu0 %v253, 18
        %v259 = vpop.permute.xlu0 %258
        %260 = vrot.lane.b32.xlu0 %v249, 18
        %v261 = vpop.permute.xlu0 %260
        %vm262 = vcmask 146432
        %v263 = vsel %vm262, %v255, %v257
        %v264 = vsel %vm262, %v257, %v259
        %v265 = vsel %vm262, %v259, %v261
        %269 = vst [vmem:[#allocation3] sm:$0xf0] %v263
        %270 = vst [vmem:[#allocation3 + $0x8] sm:$0xf0] %v264
        %271 = vst.msk [vmem:[#allocation3 + $0x10] sm:$0xf0] %vm216, %v265
        %v272 = vld [vmem:[#allocation2] sm:$0xff]
        %v273 = vld [vmem:[#allocation2 + $0x8] sm:$0xff]
        %v276 = vcombine.high %v272, %v272
        %v277 = vcombine.high %v273, %v273
        %278 = vrot.lane.b32.xlu0 %v272, 17
        %v279 = vpop.permute.xlu0 %278
        %280 = vrot.lane.b32.xlu0 %v276, 17
        %v281 = vpop.permute.xlu0 %280
        %282 = vrot.lane.b32.xlu0 %v273, 17
        %v283 = vpop.permute.xlu0 %282
        %284 = vrot.lane.b32.xlu0 %v277, 17
        %v285 = vpop.permute.xlu0 %284
        %vm286 = vcmask 138240
        %v287 = vsel %vm286, %v279, %v281
        %v288 = vsel %vm286, %v281, %v283
        %v289 = vsel %vm286, %v283, %v285
        %293 = vst [vmem:[#allocation3 + $0x18] sm:$0xf] %v287
        %294 = vst [vmem:[#allocation3 + $0x20] sm:$0xf] %v288
        %295 = vst.msk [vmem:[#allocation3 + $0x28] sm:$0xf] %vm222, %v289
        %v296 = vld [vmem:[#allocation2] sm:$0xff]
        %v297 = vld [vmem:[#allocation2 + $0x8] sm:$0xff]
        %v300 = vcombine.low %v296, %v296
        %v301 = vcombine.low %v297, %v297
        %302 = vrot.lane.b32.xlu0 %v300, 1
        %v303 = vpop.permute.xlu0 %302
        %304 = vrot.lane.b32.xlu0 %v296, 1
        %v305 = vpop.permute.xlu0 %304
        %306 = vrot.lane.b32.xlu0 %v301, 1
        %v307 = vpop.permute.xlu0 %306
        %308 = vrot.lane.b32.xlu0 %v297, 1
        %v309 = vpop.permute.xlu0 %308
        %vm310 = vcmask 7168
        %v311 = vsel %vm310, %v303, %v305
        %v312 = vsel %vm310, %v305, %v307
        %v313 = vsel %vm310, %v307, %v309
        %317 = vst [vmem:[#allocation3 + $0x18] sm:$0xf0] %v311
        %318 = vst [vmem:[#allocation3 + $0x20] sm:$0xf0] %v312
        %319 = vst.msk [vmem:[#allocation3 + $0x28] sm:$0xf0] %vm216, %v313
        %v320 = vld [vmem:[#allocation2 + $0x4] sm:$0xff]
        %v321 = vld [vmem:[#allocation2 + $0xc] sm:$0xf]
        %v323 = vcombine.high %v320, %v320
        %325 = vst [vmem:[#allocation3 + $0x30] sm:$0xf] %v320
        %326 = vst [vmem:[#allocation3 + $0x38] sm:$0xf] %v323
        %327 = vst.msk [vmem:[#allocation3 + $0x40] sm:$0xf] %vm222, %v321
        %v328 = vld [vmem:[#allocation2 + $0x4] sm:$0xff]
        %v329 = vld [vmem:[#allocation2 + $0xc] sm:$0xf]
        %v332 = vcombine.low %v328, %v328
        %v333 = vcombine.low %v329, %v329
        %334 = vrot.lane.b32.xlu0 %v332, 127
        %v335 = vpop.permute.xlu0 %334
        %336 = vrot.lane.b32.xlu0 %v328, 127
        %v337 = vpop.permute.xlu0 %336
        %338 = vrot.lane.b32.xlu0 %v333, 127
        %v339 = vpop.permute.xlu0 %338
        %vm340 = vcmask 1039360
        %v341 = vsel %vm340, %v335, %v337
        %v342 = vsel %vm340, %v337, %v339
        %346 = vst [vmem:[#allocation3 + $0x30] sm:$0xf0] %v341
        %347 = vst [vmem:[#allocation3 + $0x38] sm:$0xf0] %v342
        %348 = vst.msk [vmem:[#allocation3 + $0x40] sm:$0xf0] %vm216, %v339
        %v349 = vld [vmem:[#allocation2 + $0x4] sm:$0xff]
        %v350 = vld [vmem:[#allocation2 + $0xc] sm:$0xf]
        %v353 = vcombine.high %v349, %v349
        %354 = vrot.lane.b32.xlu0 %v349, 111
        %v355 = vpop.permute.xlu0 %354
        %356 = vrot.lane.b32.xlu0 %v353, 111
        %v357 = vpop.permute.xlu0 %356
        %358 = vrot.lane.b32.xlu0 %v350, 111
        %v359 = vpop.permute.xlu0 %358
        %vm360 = vcmask 908288
        %v361 = vsel %vm360, %v355, %v357
        %v362 = vsel %vm360, %v357, %v359
        %366 = vst [vmem:[#allocation3 + $0x48] sm:$0xf] %v361
        %367 = vst [vmem:[#allocation3 + $0x50] sm:$0xf] %v362
        %368 = vst.msk [vmem:[#allocation3 + $0x58] sm:$0xf] %vm222, %v359
        %v369 = vld [vmem:[#allocation2 + $0x4] sm:$0xff]
        %v370 = vld [vmem:[#allocation2 + $0xc] sm:$0xf]
        %v373 = vcombine.low %v369, %v369
        %v374 = vcombine.low %v370, %v370
        %375 = vrot.lane.b32.xlu0 %v373, 110
        %v376 = vpop.permute.xlu0 %375
        %377 = vrot.lane.b32.xlu0 %v369, 110
        %v378 = vpop.permute.xlu0 %377
        %379 = vrot.lane.b32.xlu0 %v374, 110
        %v380 = vpop.permute.xlu0 %379
        %vm381 = vcmask 900096
        %v382 = vsel %vm381, %v376, %v378
        %v383 = vsel %vm381, %v378, %v380
        %387 = vst [vmem:[#allocation3 + $0x48] sm:$0xf0] %v382
        %388 = vst [vmem:[#allocation3 + $0x50] sm:$0xf0] %v383
        %389 = vst.msk [vmem:[#allocation3 + $0x58] sm:$0xf0] %vm216, %v380
        %v390 = vld [vmem:[#allocation2 + $0x4] sm:$0xff]
        %v391 = vld [vmem:[#allocation2 + $0xc] sm:$0xf]
        %v394 = vcombine.high %v390, %v390
        %395 = vrot.lane.b32.xlu0 %v390, 109
        %v396 = vpop.permute.xlu0 %395
        %397 = vrot.lane.b32.xlu0 %v394, 109
        %v398 = vpop.permute.xlu0 %397
        %399 = vrot.lane.b32.xlu0 %v391, 109
        %v400 = vpop.permute.xlu0 %399
        %vm401 = vcmask 891904
        %v402 = vsel %vm401, %v396, %v398
        %v403 = vsel %vm401, %v398, %v400
        %407 = vst [vmem:[#allocation3 + $0x60] sm:$0xf] %v402
        %408 = vst [vmem:[#allocation3 + $0x68] sm:$0xf] %v403
        %409 = vst.msk [vmem:[#allocation3 + $0x70] sm:$0xf] %vm222, %v400
        %v410 = vld [vmem:[%s1] sm:$0xf]
        %v411 = vld [vmem:[#allocation3] sm:$0xff]
        %v412 = vld [vmem:[#allocation3 + $0x8] sm:$0xff]
        %v413 = vld [vmem:[#allocation3 + $0x10] sm:$0xff]
        %v414 = vld [vmem:[#allocation3 + $0x18] sm:$0xff]
        %v415 = vld [vmem:[#allocation3 + $0x20] sm:$0xff]
        %v416 = vld [vmem:[#allocation3 + $0x28] sm:$0xff]
        %v417 = vld [vmem:[#allocation3 + $0x30] sm:$0xff]
        %v418 = vld [vmem:[#allocation3 + $0x38] sm:$0xff]
        %v419 = vld [vmem:[#allocation3 + $0x40] sm:$0xff]
        %v420 = vld [vmem:[#allocation3 + $0x48] sm:$0xff]
        %v421 = vld [vmem:[#allocation3 + $0x50] sm:$0xff]
        %v422 = vld [vmem:[#allocation3 + $0x58] sm:$0xff]
        %v423 = vld [vmem:[#allocation3 + $0x60] sm:$0xf]
        %v424 = vld [vmem:[#allocation3 + $0x68] sm:$0xf]
        %v425 = vld [vmem:[#allocation3 + $0x70] sm:$0xf]
        %v426 = vld [vmem:[%s2] sm:$0xf]
        %428 = vset.pattern.permute.xlu0 0
        %429 = vperm.xlu0 %428, %v426
        %v430 = vpop.permute.xlu0 %429
        %vm432 = vcmask 293888
        %v434 = vsel %vm432, %v410, 0
        %vm436 = vcmask 1043456
        %v438 = vsel %vm436, %v423, 0
        %v441 = vsel %vm436, %v424, 0
        %v444 = vsel %vm436, %v425, 0
        %446 = vmatprep.subr.mxu0 0.0
        %447 = vmatpush1.msra.mxu0 0.0
        %448 = vmatprep.subr.mxu0 0.0
        %449 = vmatpush1.msra.mxu0 0.0
        %450 = vmatprep.subr.mxu0 0.0
        %451 = vmatpush1.msra.mxu0 0.0
        %452 = vmatprep.subr.mxu0 0.0
        %453 = vmatpush1.msra.mxu0 0.0
        %454 = vmatprep.subr.mxu0 0.0
        %455 = vmatpush1.msra.mxu0 0.0
        %456 = vmatprep.subr.mxu0 0.0
        %457 = vmatpush1.msra.mxu0 0.0
        %458 = vmatprep.subr.mxu0 0.0
        %459 = vmatpush1.msra.mxu0 0.0
        %460 = vmatprep.subr.mxu0 0.0
        %461 = vmatpush1.msra.mxu0 0.0
        %462 = vmatprep.subr.mxu0 0.0
        %463 = vmatpush1.msra.mxu0 0.0
        %464 = vmatprep.subr.mxu0 0.0
        %465 = vmatpush1.msra.mxu0 0.0
        %466 = vmatprep.subr.mxu0 0.0
        %467 = vmatpush1.msra.mxu0 0.0
        %468 = vmatprep.subr.mxu0 %v441
        %469 = vmatpush1.msra.mxu0 %v438
        %470 = vmatprep.subr.mxu0 %v421
        %471 = vmatpush1.msra.mxu0 %v420
        %472 = vmatprep.subr.mxu0 %v418
        %473 = vmatpush1.msra.mxu0 %v417
        %474 = vmatprep.subr.mxu0 %v415
        %475 = vmatpush1.msra.mxu0 %v414
        %476 = vmatprep.subr.mxu0 %v412
        %477 = vmatpush1.msra.mxu0 %v411
        %478 = vmatprep.subr.mxu0 0.0
        %479 = vmatpush2.msra.mxu0 0.0
        %480 = vmatprep.subr.mxu0 0.0
        %481 = vmatpush2.msra.mxu0 0.0
        %482 = vmatprep.subr.mxu0 0.0
        %483 = vmatpush2.msra.mxu0 0.0
        %484 = vmatprep.subr.mxu0 0.0
        %485 = vmatpush2.msra.mxu0 0.0
        %486 = vmatprep.subr.mxu0 0.0
        %487 = vmatpush2.msra.mxu0 0.0
        %488 = vmatprep.subr.mxu0 0.0
        %489 = vmatpush2.msra.mxu0 0.0
        %490 = vmatprep.subr.mxu0 0.0
        %491 = vmatpush2.msra.mxu0 0.0
        %492 = vmatprep.subr.mxu0 0.0
        %493 = vmatpush2.msra.mxu0 0.0
        %494 = vmatprep.subr.mxu0 0.0
        %495 = vmatpush2.msra.mxu0 0.0
        %496 = vmatprep.subr.mxu0 0.0
        %497 = vmatpush2.msra.mxu0 0.0
        %498 = vmatprep.subr.mxu0 0.0
        %499 = vmatpush2.msra.mxu0 0.0
        %500 = vmatprep.subr.mxu0 0.0
        %501 = vmatpush2.msra.mxu0 0.0
        %502 = vmatprep.subr.mxu0 0.0
        %503 = vmatpush2.msra.mxu0 0.0
        %504 = vmatprep.subr.mxu0 0.0
        %505 = vmatpush2.msra.mxu0 0.0
        %506 = vmatprep.subr.mxu0 0.0
        %507 = vmatpush2.msra.mxu0 0.0
        %508 = vmatprep.subr.mxu0 0.0
        %509 = vmatpush2.msra.mxu0 0.0
        %510 = vmatprep.mubr.f32.mxu0 0.0
        %511 = vmatmul.mubr.f32.gmra.mxu0 %v434
        %v512 = vpop.f32.mrf.mxu0
        %v513 = vadd.f32 %v430, %v512
        %v514 = vpop.f32.mrf.mxu0
        %v515 = vadd.f32 %v430, %v514
        %516 = vdwg.mxu0
        %517 = vmatprep.subr.mxu0 0.0
        %518 = vmatpush1.msra.mxu0 0.0
        %519 = vmatprep.subr.mxu0 0.0
        %520 = vmatpush1.msra.mxu0 0.0
        %521 = vmatprep.subr.mxu0 0.0
        %522 = vmatpush1.msra.mxu0 0.0
        %523 = vmatprep.subr.mxu0 0.0
        %524 = vmatpush1.msra.mxu0 0.0
        %525 = vmatprep.subr.mxu0 0.0
        %526 = vmatpush1.msra.mxu0 0.0
        %527 = vmatprep.subr.mxu0 0.0
        %528 = vmatpush1.msra.mxu0 0.0
        %529 = vmatprep.subr.mxu0 0.0
        %530 = vmatpush1.msra.mxu0 0.0
        %531 = vmatprep.subr.mxu0 0.0
        %532 = vmatpush1.msra.mxu0 0.0
        %533 = vmatprep.subr.mxu0 0.0
        %534 = vmatpush1.msra.mxu0 0.0
        %535 = vmatprep.subr.mxu0 0.0
        %536 = vmatpush1.msra.mxu0 0.0
        %537 = vmatprep.subr.mxu0 0.0
        %538 = vmatpush1.msra.mxu0 0.0
        %539 = vmatprep.subr.mxu0 0.0
        %540 = vmatpush1.msra.mxu0 %v444
        %541 = vmatprep.subr.mxu0 0.0
        %542 = vmatpush1.msra.mxu0 %v422
        %543 = vmatprep.subr.mxu0 0.0
        %544 = vmatpush1.msra.mxu0 %v419
        %545 = vmatprep.subr.mxu0 0.0
        %546 = vmatpush1.msra.mxu0 %v416
        %547 = vmatprep.subr.mxu0 0.0
        %548 = vmatpush1.msra.mxu0 %v413
        %549 = vmatprep.subr.mxu0 0.0
        %550 = vmatpush2.msra.mxu0 0.0
        %551 = vmatprep.subr.mxu0 0.0
        %552 = vmatpush2.msra.mxu0 0.0
        %553 = vmatprep.subr.mxu0 0.0
        %554 = vmatpush2.msra.mxu0 0.0
        %555 = vmatprep.subr.mxu0 0.0
        %556 = vmatpush2.msra.mxu0 0.0
        %557 = vmatprep.subr.mxu0 0.0
        %558 = vmatpush2.msra.mxu0 0.0
        %559 = vmatprep.subr.mxu0 0.0
        %560 = vmatpush2.msra.mxu0 0.0
        %561 = vmatprep.subr.mxu0 0.0
        %562 = vmatpush2.msra.mxu0 0.0
        %563 = vmatprep.subr.mxu0 0.0
        %564 = vmatpush2.msra.mxu0 0.0
        %565 = vmatprep.subr.mxu0 0.0
        %566 = vmatpush2.msra.mxu0 0.0
        %567 = vmatprep.subr.mxu0 0.0
        %568 = vmatpush2.msra.mxu0 0.0
        %569 = vmatprep.subr.mxu0 0.0
        %570 = vmatpush2.msra.mxu0 0.0
        %571 = vmatprep.subr.mxu0 0.0
        %572 = vmatpush2.msra.mxu0 0.0
        %573 = vmatprep.subr.mxu0 0.0
        %574 = vmatpush2.msra.mxu0 0.0
        %575 = vmatprep.subr.mxu0 0.0
        %576 = vmatpush2.msra.mxu0 0.0
        %577 = vmatprep.subr.mxu0 0.0
        %578 = vmatpush2.msra.mxu0 0.0
        %579 = vmatprep.subr.mxu0 0.0
        %580 = vmatpush2.msra.mxu0 0.0
        %581 = vmatprep.mubr.f32.mxu0 0.0
        %582 = vmatmul.mubr.f32.gmra.mxu0 %v434
        %v583 = vpop.f32.mrf.mxu0
        %v584 = vadd.f32 %v430, %v583
        %v585 = vpop.f32.mrf.mxu0
        %586 = vdwg.mxu0
        %v587 = vmax.f32 %v513, 0.0
        %v588 = vmax.f32 %v515, 0.0
        %v589 = vmax.f32 %v584, 0.0
        %v590 = vld [vmem:[%s3] sm:$0x7]
        %v592 = vlaneseq
        %v593 = vshrl.u32 %v592, 7
        %v594 = vsub.s32 0, %v593
        %v595 = vrot.slane %v590, %v594
        %v596 = vlaneseq
        %v597 = vshrl.u32 %v596, 7
        %v598 = vsub.s32 1, %v597
        %v599 = vrot.slane %v590, %v598
        %v600 = vlaneseq
        %v601 = vshrl.u32 %v600, 7
        %v602 = vsub.s32 2, %v601
        %v603 = vrot.slane %v590, %v602
        %v607 = vmul.f32 %v587, %v595
        %v608 = vmul.f32 %v588, %v599
        %v609 = vmul.f32 %v589, %v603
        %v612 = vcombine.low %v607, %v608
        %614 = vst [vmem:[#allocation2 + $0x4] sm:$0xff] %v612
        %615 = vst.msk [vmem:[#allocation2 + $0xc] sm:$0xf] %vm222, %v609
        %v616 = vld [vmem:[#allocation2] sm:$0xff]
        %v617 = vld [vmem:[#allocation2 + $0x8] sm:$0xff]
        %v620 = vcombine.high %v616, %v616
        %v621 = vcombine.high %v617, %v617
        %622 = vrot.lane.b32.xlu0 %v616, 19
        %v623 = vpop.permute.xlu0 %622
        %624 = vrot.lane.b32.xlu0 %v620, 19
        %v625 = vpop.permute.xlu0 %624
        %626 = vrot.lane.b32.xlu0 %v617, 19
        %v627 = vpop.permute.xlu0 %626
        %628 = vrot.lane.b32.xlu0 %v621, 19
        %v629 = vpop.permute.xlu0 %628
        %v630 = vsel %vm238, %v623, %v625
        %v631 = vsel %vm238, %v625, %v627
        %v632 = vsel %vm238, %v627, %v629
        %636 = vst [vmem:[#allocation3] sm:$0xf] %v630
        %637 = vst [vmem:[#allocation3 + $0x8] sm:$0xf] %v631
        %638 = vst.msk [vmem:[#allocation3 + $0x10] sm:$0xf] %vm222, %v632
        %v639 = vld [vmem:[#allocation2] sm:$0xff]
        %v640 = vld [vmem:[#allocation2 + $0x8] sm:$0xff]
        %v643 = vcombine.low %v639, %v639
        %v644 = vcombine.low %v640, %v640
        %645 = vrot.lane.b32.xlu0 %v643, 18
        %v646 = vpop.permute.xlu0 %645
        %647 = vrot.lane.b32.xlu0 %v639, 18
        %v648 = vpop.permute.xlu0 %647
        %649 = vrot.lane.b32.xlu0 %v644, 18
        %v650 = vpop.permute.xlu0 %649
        %651 = vrot.lane.b32.xlu0 %v640, 18
        %v652 = vpop.permute.xlu0 %651
        %v653 = vsel %vm262, %v646, %v648
        %v654 = vsel %vm262, %v648, %v650
        %v655 = vsel %vm262, %v650, %v652
        %659 = vst [vmem:[#allocation3] sm:$0xf0] %v653
        %660 = vst [vmem:[#allocation3 + $0x8] sm:$0xf0] %v654
        %661 = vst.msk [vmem:[#allocation3 + $0x10] sm:$0xf0] %vm216, %v655
        %v662 = vld [vmem:[#allocation2] sm:$0xff]
        %v663 = vld [vmem:[#allocation2 + $0x8] sm:$0xff]
        %v666 = vcombine.high %v662, %v662
        %v667 = vcombine.high %v663, %v663
        %668 = vrot.lane.b32.xlu0 %v662, 17
        %v669 = vpop.permute.xlu0 %668
        %670 = vrot.lane.b32.xlu0 %v666, 17
        %v671 = vpop.permute.xlu0 %670
        %672 = vrot.lane.b32.xlu0 %v663, 17
        %v673 = vpop.permute.xlu0 %672
        %674 = vrot.lane.b32.xlu0 %v667, 17
        %v675 = vpop.permute.xlu0 %674
        %v676 = vsel %vm286, %v669, %v671
        %v677 = vsel %vm286, %v671, %v673
        %v678 = vsel %vm286, %v673, %v675
        %682 = vst [vmem:[#allocation3 + $0x18] sm:$0xf] %v676
        %683 = vst [vmem:[#allocation3 + $0x20] sm:$0xf] %v677
        %684 = vst.msk [vmem:[#allocation3 + $0x28] sm:$0xf] %vm222, %v678
        %v685 = vld [vmem:[#allocation2] sm:$0xff]
        %v686 = vld [vmem:[#allocation2 + $0x8] sm:$0xff]
        %v689 = vcombine.low %v685, %v685
        %v690 = vcombine.low %v686, %v686
        %691 = vrot.lane.b32.xlu0 %v689, 1
        %v692 = vpop.permute.xlu0 %691
        %693 = vrot.lane.b32.xlu0 %v685, 1
        %v694 = vpop.permute.xlu0 %693
        %695 = vrot.lane.b32.xlu0 %v690, 1
        %v696 = vpop.permute.xlu0 %695
        %697 = vrot.lane.b32.xlu0 %v686, 1
        %v698 = vpop.permute.xlu0 %697
        %v699 = vsel %vm310, %v692, %v694
        %v700 = vsel %vm310, %v694, %v696
        %v701 = vsel %vm310, %v696, %v698
        %705 = vst [vmem:[#allocation3 + $0x18] sm:$0xf0] %v699
        %706 = vst [vmem:[#allocation3 + $0x20] sm:$0xf0] %v700
        %707 = vst.msk [vmem:[#allocation3 + $0x28] sm:$0xf0] %vm216, %v701
        %v708 = vld [vmem:[#allocation2 + $0x4] sm:$0xff]
        %v709 = vld [vmem:[#allocation2 + $0xc] sm:$0xf]
        %v711 = vcombine.high %v708, %v708
        %713 = vst [vmem:[#allocation3 + $0x30] sm:$0xf] %v708
        %714 = vst [vmem:[#allocation3 + $0x38] sm:$0xf] %v711
        %715 = vst.msk [vmem:[#allocation3 + $0x40] sm:$0xf] %vm222, %v709
        %v716 = vld [vmem:[#allocation2 + $0x4] sm:$0xff]
        %v717 = vld [vmem:[#allocation2 + $0xc] sm:$0xf]
        %v720 = vcombine.low %v716, %v716
        %v721 = vcombine.low %v717, %v717
        %722 = vrot.lane.b32.xlu0 %v720, 127
        %v723 = vpop.permute.xlu0 %722
        %724 = vrot.lane.b32.xlu0 %v716, 127
        %v725 = vpop.permute.xlu0 %724
        %726 = vrot.lane.b32.xlu0 %v721, 127
        %v727 = vpop.permute.xlu0 %726
        %v728 = vsel %vm340, %v723, %v725
        %v729 = vsel %vm340, %v725, %v727
        %733 = vst [vmem:[#allocation3 + $0x30] sm:$0xf0] %v728
        %734 = vst [vmem:[#allocation3 + $0x38] sm:$0xf0] %v729
        %735 = vst.msk [vmem:[#allocation3 + $0x40] sm:$0xf0] %vm216, %v727
        %v736 = vld [vmem:[#allocation2 + $0x4] sm:$0xff]
        %v737 = vld [vmem:[#allocation2 + $0xc] sm:$0xf]
        %v740 = vcombine.high %v736, %v736
        %741 = vrot.lane.b32.xlu0 %v736, 111
        %v742 = vpop.permute.xlu0 %741
        %743 = vrot.lane.b32.xlu0 %v740, 111
        %v744 = vpop.permute.xlu0 %743
        %745 = vrot.lane.b32.xlu0 %v737, 111
        %v746 = vpop.permute.xlu0 %745
        %v747 = vsel %vm360, %v742, %v744
        %v748 = vsel %vm360, %v744, %v746
        %752 = vst [vmem:[#allocation3 + $0x48] sm:$0xf] %v747
        %753 = vst [vmem:[#allocation3 + $0x50] sm:$0xf] %v748
        %754 = vst.msk [vmem:[#allocation3 + $0x58] sm:$0xf] %vm222, %v746
        %v755 = vld [vmem:[#allocation2 + $0x4] sm:$0xff]
        %v756 = vld [vmem:[#allocation2 + $0xc] sm:$0xf]
        %v759 = vcombine.low %v755, %v755
        %v760 = vcombine.low %v756, %v756
        %761 = vrot.lane.b32.xlu0 %v759, 110
        %v762 = vpop.permute.xlu0 %761
        %763 = vrot.lane.b32.xlu0 %v755, 110
        %v764 = vpop.permute.xlu0 %763
        %765 = vrot.lane.b32.xlu0 %v760, 110
        %v766 = vpop.permute.xlu0 %765
        %v767 = vsel %vm381, %v762, %v764
        %v768 = vsel %vm381, %v764, %v766
        %772 = vst [vmem:[#allocation3 + $0x48] sm:$0xf0] %v767
        %773 = vst [vmem:[#allocation3 + $0x50] sm:$0xf0] %v768
        %774 = vst.msk [vmem:[#allocation3 + $0x58] sm:$0xf0] %vm216, %v766
        %v775 = vld [vmem:[#allocation2 + $0x4] sm:$0xff]
        %v776 = vld [vmem:[#allocation2 + $0xc] sm:$0xf]
        %v779 = vcombine.high %v775, %v775
        %780 = vrot.lane.b32.xlu0 %v775, 109
        %v781 = vpop.permute.xlu0 %780
        %782 = vrot.lane.b32.xlu0 %v779, 109
        %v783 = vpop.permute.xlu0 %782
        %784 = vrot.lane.b32.xlu0 %v776, 109
        %v785 = vpop.permute.xlu0 %784
        %v786 = vsel %vm401, %v781, %v783
        %v787 = vsel %vm401, %v783, %v785
        %791 = vst [vmem:[#allocation3 + $0x60] sm:$0xf] %v786
        %792 = vst [vmem:[#allocation3 + $0x68] sm:$0xf] %v787
        %793 = vst.msk [vmem:[#allocation3 + $0x70] sm:$0xf] %vm222, %v785
        %s794 = scalar_lea.vmem %s1, 4
        %v795 = vld [vmem:[%s794] sm:$0xf]
        %v796 = vld [vmem:[#allocation3] sm:$0xff]
        %v797 = vld [vmem:[#allocation3 + $0x8] sm:$0xff]
        %v798 = vld [vmem:[#allocation3 + $0x10] sm:$0xff]
        %v799 = vld [vmem:[#allocation3 + $0x18] sm:$0xff]
        %v800 = vld [vmem:[#allocation3 + $0x20] sm:$0xff]
        %v801 = vld [vmem:[#allocation3 + $0x28] sm:$0xff]
        %v802 = vld [vmem:[#allocation3 + $0x30] sm:$0xff]
        %v803 = vld [vmem:[#allocation3 + $0x38] sm:$0xff]
        %v804 = vld [vmem:[#allocation3 + $0x40] sm:$0xff]
        %v805 = vld [vmem:[#allocation3 + $0x48] sm:$0xff]
        %v806 = vld [vmem:[#allocation3 + $0x50] sm:$0xff]
        %v807 = vld [vmem:[#allocation3 + $0x58] sm:$0xff]
        %v808 = vld [vmem:[#allocation3 + $0x60] sm:$0xf]
        %v809 = vld [vmem:[#allocation3 + $0x68] sm:$0xf]
        %v810 = vld [vmem:[#allocation3 + $0x70] sm:$0xf]
        %s811 = scalar_lea.vmem %s2, 4
        %v812 = vld [vmem:[%s811] sm:$0xf]
        %814 = vset.pattern.permute.xlu0 0
        %815 = vperm.xlu0 %814, %v812
        %v816 = vpop.permute.xlu0 %815
        %v819 = vsel %vm432, %v795, 0
        %v822 = vsel %vm436, %v808, 0
        %v825 = vsel %vm436, %v809, 0
        %v828 = vsel %vm436, %v810, 0
        %830 = vmatprep.subr.mxu0 0.0
        %831 = vmatpush1.msra.mxu0 0.0
        %832 = vmatprep.subr.mxu0 0.0
        %833 = vmatpush1.msra.mxu0 0.0
        %834 = vmatprep.subr.mxu0 0.0
        %835 = vmatpush1.msra.mxu0 0.0
        %836 = vmatprep.subr.mxu0 0.0
        %837 = vmatpush1.msra.mxu0 0.0
        %838 = vmatprep.subr.mxu0 0.0
        %839 = vmatpush1.msra.mxu0 0.0
        %840 = vmatprep.subr.mxu0 0.0
        %841 = vmatpush1.msra.mxu0 0.0
        %842 = vmatprep.subr.mxu0 0.0
        %843 = vmatpush1.msra.mxu0 0.0
        %844 = vmatprep.subr.mxu0 0.0
        %845 = vmatpush1.msra.mxu0 0.0
        %846 = vmatprep.subr.mxu0 0.0
        %847 = vmatpush1.msra.mxu0 0.0
        %848 = vmatprep.subr.mxu0 0.0
        %849 = vmatpush1.msra.mxu0 0.0
        %850 = vmatprep.subr.mxu0 0.0
        %851 = vmatpush1.msra.mxu0 0.0
        %852 = vmatprep.subr.mxu0 %v825
        %853 = vmatpush1.msra.mxu0 %v822
        %854 = vmatprep.subr.mxu0 %v806
        %855 = vmatpush1.msra.mxu0 %v805
        %856 = vmatprep.subr.mxu0 %v803
        %857 = vmatpush1.msra.mxu0 %v802
        %858 = vmatprep.subr.mxu0 %v800
        %859 = vmatpush1.msra.mxu0 %v799
        %860 = vmatprep.subr.mxu0 %v797
        %861 = vmatpush1.msra.mxu0 %v796
        %862 = vmatprep.subr.mxu0 0.0
        %863 = vmatpush2.msra.mxu0 0.0
        %864 = vmatprep.subr.mxu0 0.0
        %865 = vmatpush2.msra.mxu0 0.0
        %866 = vmatprep.subr.mxu0 0.0
        %867 = vmatpush2.msra.mxu0 0.0
        %868 = vmatprep.subr.mxu0 0.0
        %869 = vmatpush2.msra.mxu0 0.0
        %870 = vmatprep.subr.mxu0 0.0
        %871 = vmatpush2.msra.mxu0 0.0
        %872 = vmatprep.subr.mxu0 0.0
        %873 = vmatpush2.msra.mxu0 0.0
        %874 = vmatprep.subr.mxu0 0.0
        %875 = vmatpush2.msra.mxu0 0.0
        %876 = vmatprep.subr.mxu0 0.0
        %877 = vmatpush2.msra.mxu0 0.0
        %878 = vmatprep.subr.mxu0 0.0
        %879 = vmatpush2.msra.mxu0 0.0
        %880 = vmatprep.subr.mxu0 0.0
        %881 = vmatpush2.msra.mxu0 0.0
        %882 = vmatprep.subr.mxu0 0.0
        %883 = vmatpush2.msra.mxu0 0.0
        %884 = vmatprep.subr.mxu0 0.0
        %885 = vmatpush2.msra.mxu0 0.0
        %886 = vmatprep.subr.mxu0 0.0
        %887 = vmatpush2.msra.mxu0 0.0
        %888 = vmatprep.subr.mxu0 0.0
        %889 = vmatpush2.msra.mxu0 0.0
        %890 = vmatprep.subr.mxu0 0.0
        %891 = vmatpush2.msra.mxu0 0.0
        %892 = vmatprep.subr.mxu0 0.0
        %893 = vmatpush2.msra.mxu0 0.0
        %894 = vmatprep.mubr.f32.mxu0 0.0
        %895 = vmatmul.mubr.f32.gmra.mxu0 %v819
        %v896 = vpop.f32.mrf.mxu0
        %v897 = vadd.f32 %v816, %v896
        %v898 = vpop.f32.mrf.mxu0
        %v899 = vadd.f32 %v816, %v898
        %900 = vdwg.mxu0
        %901 = vmatprep.subr.mxu0 0.0
        %902 = vmatpush1.msra.mxu0 0.0
        %903 = vmatprep.subr.mxu0 0.0
        %904 = vmatpush1.msra.mxu0 0.0
        %905 = vmatprep.subr.mxu0 0.0
        %906 = vmatpush1.msra.mxu0 0.0
        %907 = vmatprep.subr.mxu0 0.0
        %908 = vmatpush1.msra.mxu0 0.0
        %909 = vmatprep.subr.mxu0 0.0
        %910 = vmatpush1.msra.mxu0 0.0
        %911 = vmatprep.subr.mxu0 0.0
        %912 = vmatpush1.msra.mxu0 0.0
        %913 = vmatprep.subr.mxu0 0.0
        %914 = vmatpush1.msra.mxu0 0.0
        %915 = vmatprep.subr.mxu0 0.0
        %916 = vmatpush1.msra.mxu0 0.0
        %917 = vmatprep.subr.mxu0 0.0
        %918 = vmatpush1.msra.mxu0 0.0
        %919 = vmatprep.subr.mxu0 0.0
        %920 = vmatpush1.msra.mxu0 0.0
        %921 = vmatprep.subr.mxu0 0.0
        %922 = vmatpush1.msra.mxu0 0.0
        %923 = vmatprep.subr.mxu0 0.0
        %924 = vmatpush1.msra.mxu0 %v828
        %925 = vmatprep.subr.mxu0 0.0
        %926 = vmatpush1.msra.mxu0 %v807
        %927 = vmatprep.subr.mxu0 0.0
        %928 = vmatpush1.msra.mxu0 %v804
        %929 = vmatprep.subr.mxu0 0.0
        %930 = vmatpush1.msra.mxu0 %v801
        %931 = vmatprep.subr.mxu0 0.0
        %932 = vmatpush1.msra.mxu0 %v798
        %933 = vmatprep.subr.mxu0 0.0
        %934 = vmatpush2.msra.mxu0 0.0
        %935 = vmatprep.subr.mxu0 0.0
        %936 = vmatpush2.msra.mxu0 0.0
        %937 = vmatprep.subr.mxu0 0.0
        %938 = vmatpush2.msra.mxu0 0.0
        %939 = vmatprep.subr.mxu0 0.0
        %940 = vmatpush2.msra.mxu0 0.0
        %941 = vmatprep.subr.mxu0 0.0
        %942 = vmatpush2.msra.mxu0 0.0
        %943 = vmatprep.subr.mxu0 0.0
        %944 = vmatpush2.msra.mxu0 0.0
        %945 = vmatprep.subr.mxu0 0.0
        %946 = vmatpush2.msra.mxu0 0.0
        %947 = vmatprep.subr.mxu0 0.0
        %948 = vmatpush2.msra.mxu0 0.0
        %949 = vmatprep.subr.mxu0 0.0
        %950 = vmatpush2.msra.mxu0 0.0
        %951 = vmatprep.subr.mxu0 0.0
        %952 = vmatpush2.msra.mxu0 0.0
        %953 = vmatprep.subr.mxu0 0.0
        %954 = vmatpush2.msra.mxu0 0.0
        %955 = vmatprep.subr.mxu0 0.0
        %956 = vmatpush2.msra.mxu0 0.0
        %957 = vmatprep.subr.mxu0 0.0
        %958 = vmatpush2.msra.mxu0 0.0
        %959 = vmatprep.subr.mxu0 0.0
        %960 = vmatpush2.msra.mxu0 0.0
        %961 = vmatprep.subr.mxu0 0.0
        %962 = vmatpush2.msra.mxu0 0.0
        %963 = vmatprep.subr.mxu0 0.0
        %964 = vmatpush2.msra.mxu0 0.0
        %965 = vmatprep.mubr.f32.mxu0 0.0
        %966 = vmatmul.mubr.f32.gmra.mxu0 %v819
        %v967 = vpop.f32.mrf.mxu0
        %v968 = vadd.f32 %v816, %v967
        %v969 = vpop.f32.mrf.mxu0
        %970 = vdwg.mxu0
        %v971 = vmax.f32 %v897, 0.0
        %v972 = vmax.f32 %v899, 0.0
        %v973 = vmax.f32 %v968, 0.0
        %v974 = vld [vmem:[%s189] sm:$0xf]
        %976 = vset.pattern.permute.xlu0 27
        %977 = vperm.xlu0 %976, %v974
        %v978 = vpop.permute.xlu0 %977
        %v981 = vunpack.c.l.s4 839922192
        %v982 = vunpack.c.0.s8 %v981
        %v983 = vlaneseq
        %v984 = vshrl.u32 %v983, 7
        %v985 = vsub.s32 %v982, %v984
        %v986 = vrot.slane %v978, %v985
        %v987 = vadd.f32 %v971, %v986
        %989 = vrot.lane.b32.xlu0 %v987, 107
        %v990 = vpop.permute.xlu0 %989
        %vm992 = vcmask 93184
        %993 = vst.msk [vmem:[%s213] sm:$0xf] %vm992, %v990
        %v994 = vld [vmem:[%s189] sm:$0xf]
        %996 = vset.pattern.permute.xlu0 45
        %997 = vperm.xlu0 %996, %v994
        %v998 = vpop.permute.xlu0 %997
        %v1001 = vunpack.c.l.s4 839922192
        %v1002 = vunpack.c.0.s8 %v1001
        %v1003 = vlaneseq
        %v1004 = vshrl.u32 %v1003, 7
        %v1005 = vsub.s32 %v1002, %v1004
        %v1006 = vrot.slane %v998, %v1005
        %v1007 = vadd.f32 %v971, %v1006
        %1009 = vrot.lane.b32.xlu0 %v1007, 101
        %v1010 = vpop.permute.xlu0 %1009
        %vm1012 = vcmask 191584
        %1013 = vst.msk [vmem:[%s213] sm:$0xf] %vm1012, %v1010
        %v1014 = vld [vmem:[%s189] sm:$0xf]
        %1016 = vset.pattern.permute.xlu0 63
        %1017 = vperm.xlu0 %1016, %v1014
        %v1018 = vpop.permute.xlu0 %1017
        %v1021 = vunpack.c.l.s4 839922192
        %v1022 = vunpack.c.0.s8 %v1021
        %v1023 = vlaneseq
        %v1024 = vshrl.u32 %v1023, 7
        %v1025 = vsub.s32 %v1022, %v1024
        %v1026 = vrot.slane %v1018, %v1025
        %v1027 = vadd.f32 %v971, %v1026
        %1029 = vrot.lane.b32.xlu0 %v1027, 95
        %v1030 = vpop.permute.xlu0 %1029
        %vm1032 = vcmask 289984
        %1033 = vst.msk [vmem:[%s213] sm:$0xf] %vm1032, %v1030
        %v1034 = vld [vmem:[%s189] sm:$0xf]
        %1036 = vset.pattern.permute.xlu0 81
        %1037 = vperm.xlu0 %1036, %v1034
        %v1038 = vpop.permute.xlu0 %1037
        %v1041 = vunpack.c.l.s4 839922192
        %v1042 = vunpack.c.0.s8 %v1041
        %v1043 = vlaneseq
        %v1044 = vshrl.u32 %v1043, 7
        %v1045 = vsub.s32 %v1042, %v1044
        %v1046 = vrot.slane %v1038, %v1045
        %v1047 = vadd.f32 %v971, %v1046
        %1049 = vrot.lane.b32.xlu0 %v1047, 89
        %v1050 = vpop.permute.xlu0 %1049
        %vm1052 = vcmask 388384
        %1053 = vst.msk [vmem:[%s213] sm:$0xf] %vm1052, %v1050
        %v1054 = vld [vmem:[%s189] sm:$0xf]
        %1056 = vset.pattern.permute.xlu0 99
        %1057 = vperm.xlu0 %1056, %v1054
        %v1058 = vpop.permute.xlu0 %1057
        %v1061 = vunpack.c.l.s4 839922192
        %v1062 = vunpack.c.0.s8 %v1061
        %v1063 = vlaneseq
        %v1064 = vshrl.u32 %v1063, 7
        %v1065 = vsub.s32 %v1062, %v1064
        %v1066 = vrot.slane %v1058, %v1065
        %v1067 = vadd.f32 %v971, %v1066
        %1069 = vrot.lane.b32.xlu0 %v1067, 83
        %v1070 = vpop.permute.xlu0 %1069
        %vm1072 = vcmask 486784
        %1073 = vst.msk [vmem:[%s213] sm:$0xf] %vm1072, %v1070
        %v1074 = vld [vmem:[%s189] sm:$0xf]
        %1076 = vset.pattern.permute.xlu0 117
        %1077 = vperm.xlu0 %1076, %v1074
        %v1078 = vpop.permute.xlu0 %1077
        %v1081 = vunpack.c.l.s4 839922192
        %v1082 = vunpack.c.0.s8 %v1081
        %v1083 = vlaneseq
        %v1084 = vshrl.u32 %v1083, 7
        %v1085 = vsub.s32 %v1082, %v1084
        %v1086 = vrot.slane %v1078, %v1085
        %v1087 = vadd.f32 %v971, %v1086
        %1089 = vrot.lane.b32.xlu0 %v1087, 77
        %v1090 = vpop.permute.xlu0 %1089
        %vm1092 = vcmask 585184
        %1093 = vst.msk [vmem:[%s213] sm:$0xf] %vm1092, %v1090
        %v1094 = vld [vmem:[%s189 + $0x4] sm:$0xf]
        %1096 = vset.pattern.permute.xlu0 7
        %1097 = vperm.xlu0 %1096, %v1094
        %v1098 = vpop.permute.xlu0 %1097
        %v1101 = vunpack.c.l.s4 839922192
        %v1102 = vunpack.c.0.s8 %v1101
        %v1103 = vlaneseq
        %v1104 = vshrl.u32 %v1103, 7
        %v1105 = vsub.s32 %v1102, %v1104
        %v1106 = vrot.slane %v1098, %v1105
        %v1107 = vadd.f32 %v972, %v1106
        %1109 = vrot.lane.b32.xlu0 %v1107, 71
        %v1110 = vpop.permute.xlu0 %1109
        %vm1112 = vcmask 683584
        %1113 = vst.msk [vmem:[%s213] sm:$0xf] %vm1112, %v1110
        %v1114 = vld [vmem:[%s189 + $0x4] sm:$0xf]
        %1116 = vset.pattern.permute.xlu0 25
        %1117 = vperm.xlu0 %1116, %v1114
        %v1118 = vpop.permute.xlu0 %1117
        %v1121 = vunpack.c.l.s4 839922192
        %v1122 = vunpack.c.0.s8 %v1121
        %v1123 = vlaneseq
        %v1124 = vshrl.u32 %v1123, 7
        %v1125 = vsub.s32 %v1122, %v1124
        %v1126 = vrot.slane %v1118, %v1125
        %v1127 = vadd.f32 %v972, %v1126
        %1129 = vrot.lane.b32.xlu0 %v1127, 65
        %v1130 = vpop.permute.xlu0 %1129
        %vm1132 = vcmask 781984
        %1133 = vst.msk [vmem:[%s213] sm:$0xf] %vm1132, %v1130
        %v1134 = vld [vmem:[%s189 + $0x4] sm:$0xf]
        %1136 = vset.pattern.permute.xlu0 43
        %1137 = vperm.xlu0 %1136, %v1134
        %v1138 = vpop.permute.xlu0 %1137
        %v1141 = vunpack.c.l.s4 839922192
        %v1142 = vunpack.c.0.s8 %v1141
        %v1143 = vlaneseq
        %v1144 = vshrl.u32 %v1143, 7
        %v1145 = vsub.s32 %v1142, %v1144
        %v1146 = vrot.slane %v1138, %v1145
        %v1147 = vadd.f32 %v972, %v1146
        %1149 = vrot.lane.b32.xlu0 %v1147, 59
        %v1150 = vpop.permute.xlu0 %1149
        %vm1152 = vcmask 880384
        %1153 = vst.msk [vmem:[%s213] sm:$0xf] %vm1152, %v1150
        %v1154 = vld [vmem:[%s189 + $0x4] sm:$0xf]
        %1156 = vset.pattern.permute.xlu0 61
        %1157 = vperm.xlu0 %1156, %v1154
        %v1158 = vpop.permute.xlu0 %1157
        %v1161 = vunpack.c.l.s4 839922192
        %v1162 = vunpack.c.0.s8 %v1161
        %v1163 = vlaneseq
        %v1164 = vshrl.u32 %v1163, 7
        %v1165 = vsub.s32 %v1162, %v1164
        %v1166 = vrot.slane %v1158, %v1165
        %v1167 = vadd.f32 %v972, %v1166
        %1169 = vrot.lane.b32.xlu0 %v1167, 53
        %v1170 = vpop.permute.xlu0 %1169
        %vm1172 = vcmask 978784
        %1173 = vst.msk [vmem:[%s213] sm:$0xf] %vm1172, %v1170
        %v1174 = vld [vmem:[%s189 + $0x4] sm:$0xf]
        %1176 = vset.pattern.permute.xlu0 79
        %1177 = vperm.xlu0 %1176, %v1174
        %v1178 = vpop.permute.xlu0 %1177
        %v1181 = vunpack.c.l.s4 839922192
        %v1182 = vunpack.c.0.s8 %v1181
        %v1183 = vlaneseq
        %v1184 = vshrl.u32 %v1183, 7
        %v1185 = vsub.s32 %v1182, %v1184
        %v1186 = vrot.slane %v1178, %v1185
        %v1187 = vadd.f32 %v972, %v1186
        %1189 = vrot.lane.b32.xlu0 %v1187, 47
        %v1190 = vpop.permute.xlu0 %1189
        %v1191 = vrot.slane %v1190, 4
        %vm1192 = vcmask 384000
        %v1193 = vsel %vm1192, %v1191, %v1190
        %vm1195 = vcmask 1044416
        %vm1196 = vcmask 31748
        %vm1197 = vmor %vm1196, %vm1195
        %1198 = vst.msk [vmem:[%s213] sm:$0xff] %vm1197, %v1193
        %v1199 = vld [vmem:[%s189 + $0x4] sm:$0xf]
        %1201 = vset.pattern.permute.xlu0 97
        %1202 = vperm.xlu0 %1201, %v1199
        %v1203 = vpop.permute.xlu0 %1202
        %v1206 = vunpack.c.l.s4 839922192
        %v1207 = vunpack.c.0.s8 %v1206
        %v1208 = vlaneseq
        %v1209 = vshrl.u32 %v1208, 7
        %v1210 = vsub.s32 %v1207, %v1209
        %v1211 = vrot.slane %v1203, %v1210
        %v1212 = vadd.f32 %v972, %v1211
        %1214 = vrot.lane.b32.xlu0 %v1212, 41
        %v1215 = vpop.permute.xlu0 %1214
        %vm1217 = vcmask 125984
        %1218 = vst.msk [vmem:[%s213 + $0x4] sm:$0xf] %vm1217, %v1215
        %v1219 = vld [vmem:[%s189 + $0x4] sm:$0xf]
        %1221 = vset.pattern.permute.xlu0 115
        %1222 = vperm.xlu0 %1221, %v1219
        %v1223 = vpop.permute.xlu0 %1222
        %v1226 = vunpack.c.l.s4 839922192
        %v1227 = vunpack.c.0.s8 %v1226
        %v1228 = vlaneseq
        %v1229 = vshrl.u32 %v1228, 7
        %v1230 = vsub.s32 %v1227, %v1229
        %v1231 = vrot.slane %v1223, %v1230
        %v1232 = vadd.f32 %v972, %v1231
        %1234 = vrot.lane.b32.xlu0 %v1232, 35
        %v1235 = vpop.permute.xlu0 %1234
        %vm1237 = vcmask 224384
        %1238 = vst.msk [vmem:[%s213 + $0x4] sm:$0xf] %vm1237, %v1235
        %v1239 = vld [vmem:[%s189 + $0x8] sm:$0xf]
        %1241 = vset.pattern.permute.xlu0 5
        %1242 = vperm.xlu0 %1241, %v1239
        %v1243 = vpop.permute.xlu0 %1242
        %v1246 = vunpack.c.l.s4 839922192
        %v1247 = vunpack.c.0.s8 %v1246
        %v1248 = vlaneseq
        %v1249 = vshrl.u32 %v1248, 7
        %v1250 = vsub.s32 %v1247, %v1249
        %v1251 = vrot.slane %v1243, %v1250
        %1253 = vrot.lane.b32.xlu0 %v1251, 127
        %v1254 = vpop.permute.xlu0 %1253
        %v1256 = vadd.f32 %v972, %v1254
        %v1257 = vadd.f32 %v973, %v1254
        %v1260 = vcombine.low %v1256, %v1257
        %1261 = vrot.lane.b32.xlu0 %v1260, 29
        %v1262 = vpop.permute.xlu0 %1261
        %v1263 = vrot.slane %v1262, 4
        %vm1264 = vcmask 236544
        %v1265 = vsel %vm1264, %v1262, %v1263
        %vm1267 = vcmask 322784
        %1268 = vst.msk [vmem:[%s213 + $0x4] sm:$0xf] %vm1267, %v1265
        %v1269 = vld [vmem:[%s189 + $0x8] sm:$0xf]
        %1271 = vset.pattern.permute.xlu0 23
        %1272 = vperm.xlu0 %1271, %v1269
        %v1273 = vpop.permute.xlu0 %1272
        %v1276 = vunpack.c.l.s4 839922192
        %v1277 = vunpack.c.0.s8 %v1276
        %v1278 = vlaneseq
        %v1279 = vshrl.u32 %v1278, 7
        %v1280 = vsub.s32 %v1277, %v1279
        %v1281 = vrot.slane %v1273, %v1280
        %v1282 = vadd.f32 %v973, %v1281
        %1284 = vrot.lane.b32.xlu0 %v1282, 23
        %v1285 = vpop.permute.xlu0 %1284
        %vm1287 = vcmask 421184
        %1288 = vst.msk [vmem:[%s213 + $0x4] sm:$0xf] %vm1287, %v1285
        %v1289 = vld [vmem:[%s189 + $0x8] sm:$0xf]
        %1291 = vset.pattern.permute.xlu0 41
        %1292 = vperm.xlu0 %1291, %v1289
        %v1293 = vpop.permute.xlu0 %1292
        %v1296 = vunpack.c.l.s4 839922192
        %v1297 = vunpack.c.0.s8 %v1296
        %v1298 = vlaneseq
        %v1299 = vshrl.u32 %v1298, 7
        %v1300 = vsub.s32 %v1297, %v1299
        %v1301 = vrot.slane %v1293, %v1300
        %v1302 = vadd.f32 %v973, %v1301
        %1304 = vrot.lane.b32.xlu0 %v1302, 17
        %v1305 = vpop.permute.xlu0 %1304
        %vm1307 = vcmask 519584
        %1308 = vst.msk [vmem:[%s213 + $0x4] sm:$0xf] %vm1307, %v1305
        %s1309 = sand.u32 %s118, 1
        %s1310 = scalar_lea.sflag [#allocation6], %s1309
        %s1311 = sand.u32 %s118, 1
        %s1312 = smul.addr %s1311, 8
        %s1313 = scalar_lea.vmem [#allocation7], %s1312
        // Predicated region
        $region41: #{tpu_custom_call.1} parent=35 // pred_check
          %p1314 = pneg %p128
        $region42: #{tpu_custom_call.1} parent=35 // pred_check_branch
          %1316 = sbr.rel (%p1314) target = $region44
        $region43: #{tpu_custom_call.1} parent=35 // pred_region
          %s1318 = ssub.s32 128, 128
          %1319 = vsyncadd %s1310, %s1318
          %s1320 = smul.addr %s21, 2
          %s1321 = smul.addr %s1320, 64
          %s1322 = scalar_lea.hbm %s4, %s1321
          %s1324 = sshll.u32 %s1313, 4
          %s1325 = int_to_ptr.vmem [resolvable:$true] %s1324
          %1327 = dma.vmem_to_hbm [thread:$0]  %s1325, 128, %s1322, %s1310
        $region44: #{tpu_custom_call.1} parent=35 // pred_fallthru
          _
      $region36: #{tpu_custom_call.1} parent=5 // pred_fallthru
        _
      %p1328 = scmp.le.s32.totalorder 2, %s16
      // Predicated region
      $region45: #{tpu_custom_call.1} parent=5 // pred_check
        %p1329 = pneg %p1328
      $region46: #{tpu_custom_call.1} parent=5 // pred_check_branch
        %1331 = sbr.rel (%p1329) target = $region48
      $region47: #{tpu_custom_call.1} parent=5 // pred_region
        %s1332 = ssub.s32 %s16, 2
        // Predicated region
        $region49: #{tpu_custom_call.1} parent=47 // pred_check
          %p1333 = pneg %p134
        $region50: #{tpu_custom_call.1} parent=47 // pred_check_branch
          %1335 = sbr.rel (%p1333) target = $region52
        $region51: #{tpu_custom_call.1} parent=47 // pred_region
          %s1336 = sand.u32 %s119, 1
          %s1337 = scalar_lea.sflag [#allocation6], %s1336
          %s1338 = sand.u32 %s119, 1
          %s1339 = smul.addr %s1338, 8
          %s1340 = scalar_lea.vmem [#allocation7], %s1339
          %1341 = dma.done %s1337, 128
        $region52: #{tpu_custom_call.1} parent=47 // pred_fallthru
          _
      $region48: #{tpu_custom_call.1} parent=5 // pred_fallthru
        _
    $region6: #{tpu_custom_call.1} parent=1 // loop_footer
      %s20 = sadd.s32 1, %s16
    $region7: #{tpu_custom_call.1} parent=1 // loop_footer_branch
      %15 = sbr.rel target = $region3
    $region8: #{tpu_custom_call.1} parent=1 // loop_exit
      _
    %1342 = vsyncpa [#allocation5], 1
    %s1343 = scalar_lea.sflag [#allocation5], 1
    %1344 = vsyncpa %s1343, 1
    %1345 = vsyncpa [#allocation6], 1
    %s1346 = scalar_lea.sflag [#allocation6], 1
    %1347 = vsyncpa %s1346, 1

</llo_original>
